<compile_context>
chip_gen: v6e
topology: v6e:2x2x1
jax: 0.10.0
libtpu: 0.0.40
codegen_flags: <defaults>
</compile_context>

<pallas_src>
import functools
import math

import jax
import jax.numpy as jnp
from jax import lax
from jax.experimental import pallas as pl
from jax.experimental.pallas import tpu as pltpu

# ----- hyperparameters taken from the PyTorch module -------------------------
WORD = "Add temperature sampling for more creative output"
INPUT_SIZE = len(WORD) - 1   # 48 : nn.Embedding num_embeddings
VOCAB_SIZE = len(WORD)       # 49 : Linear output features
EMBED_DIM = 3
HIDDEN_1 = 8
HIDDEN_2 = 4

V_PAD = 128                  # lane-dense padded vocab width

# ----- packed-weights layout: (W_ROWS, 128) f32, each operand 8-row aligned ---
WHH1_R = 0    # rows  0:8,  lanes 0:H1   : whh1 (H1,H1)
WIH2_R = 8    # rows  8:16, lanes 0:H2   : wih2 (H1,H2)
WHH2_R = 16   # rows 16:20, lanes 0:H2   : whh2 (H2,H2)
WIH1_R = 24   # rows 24:27, lanes 0:H1   : wih1 (E,H1)
B1_R = 27     # row  27,    lanes 0:H1   : b1  (= b_ih1 + b_hh1, pre-fused)
B2_R = 28     # row  28,    lanes 0:H2   : b2  (= b_ih2 + b_hh2, pre-fused)
WOUT_R = 32   # rows 32:36, lanes 0:128  : wout padded to (H2,128)
BOUT_R = 36   # row  36,    lanes 0:128  : bout padded to (1,128)
W_ROWS = 40


def _erf_approx(x):
    # Abramowitz & Stegun 7.1.26: max abs error ~1.5e-7.  Built only from
    # abs/exp/mul/add/where so it lowers cleanly inside the Mosaic kernel.
    p = 0.3275911
    a1, a2, a3, a4, a5 = (0.254829592, -0.284496736, 1.421413741,
                          -1.453152027, 1.061405429)
    ax = jnp.abs(x)
    t = 1.0 / (1.0 + p * ax)
    poly = ((((a5 * t + a4) * t + a3) * t + a2) * t + a1) * t
    e = 1.0 - poly * jnp.exp(-ax * ax)
    return jnp.where(x < 0, -e, e)


def _gelu_kernel(x):
    # PyTorch nn.GELU() default ("none"): 0.5*x*(1+erf(x/sqrt(2)))
    return 0.5 * x * (1.0 + _erf_approx(x * (1.0 / math.sqrt(2.0))))


def _gelu_exact(x):
    # Exact-erf version for the pure-JAX reference.
    return 0.5 * x * (1.0 + lax.erf(x * (1.0 / math.sqrt(2.0))))


def rnn_kernel(x_ref, w_ref, out_ref, *, B, T):
    """Two RNN layers + GELU + output Linear; only the recurrences stay serial."""
    f32 = jnp.float32
    H1, H2, E = HIDDEN_1, HIDDEN_2, EMBED_DIM

    # ---- single packed-weights buffer: static sub-views (one DMA total) ----
    wih1 = w_ref[WIH1_R:WIH1_R + E, :H1]          # (E, H1)
    whh1 = w_ref[WHH1_R:WHH1_R + H1, :H1]         # (H1, H1)
    b1 = w_ref[B1_R:B1_R + 1, :H1]                # (1, H1)
    wih2 = w_ref[WIH2_R:WIH2_R + H1, :H2]         # (H1, H2)
    whh2 = w_ref[WHH2_R:WHH2_R + H2, :H2]         # (H2, H2)
    b2 = w_ref[B2_R:B2_R + 1, :H2]                # (1, H2)
    wout = w_ref[WOUT_R:WOUT_R + H2, :]           # (H2, 128)  (V padded)
    bout = w_ref[BOUT_R:BOUT_R + 1, :]            # (1, 128)

    # ---- hoisted layer-1 input projection: one batched MXU op, bias folded ----
    xp = jnp.dot(x_ref[...], wih1, preferred_element_type=f32) + b1    # (B*T, H1)
    xp3 = xp.reshape(B, T, H1)                                         # cheap split

    # ---- loop A: layer-1 recurrence only (fully unrolled, values stay in vregs) ----
    h1 = jnp.zeros((B, H1), f32)
    h1_steps = []
    for t in range(T):
        h1 = jnp.tanh(xp3[:, t, :]
                      + jnp.dot(h1, whh1, preferred_element_type=f32))
        h1_steps.append(h1)
    h1_all = jnp.stack(h1_steps, axis=1).reshape(B * T, H1)            # row = b*T+t

    # ---- hoisted GELU + layer-2 input projection (batched, off the serial path) ----
    g_all = _gelu_kernel(h1_all)                                       # (B*T, H1)
    gproj = jnp.dot(g_all, wih2, preferred_element_type=f32) + b2      # (B*T, H2)
    gproj3 = gproj.reshape(B, T, H2)

    # ---- loop B: layer-2 recurrence only ----
    h2 = jnp.zeros((B, H2), f32)
    h2_steps = []
    for t in range(T):
        h2 = jnp.tanh(gproj3[:, t, :]
                      + jnp.dot(h2, whh2, preferred_element_type=f32))
        h2_steps.append(h2)
    h2_all = jnp.stack(h2_steps, axis=1).reshape(B * T, H2)

    # ---- hoisted output Linear: lane-dense (B*T, 128) block ----
    logits = jnp.dot(h2_all, wout, preferred_element_type=f32) + bout  # (B*T, 128)

    # ---- single merged output: logits rows + one padded row block of h-states ----
    hpad = jnp.concatenate(
        [h1, h2, jnp.zeros((B, V_PAD - H1 - H2), f32)], axis=1)        # (B, 128)
    out_ref[0:B * T, :] = logits                                       # full-width store
    out_ref[B * T:B * T + B, :] = hpad


def _pack_weights(wih1, whh1, b1, wih2, whh2, b2, wout, bout):
    """Pack all weights/biases into one (W_ROWS, 128) f32 buffer (one input DMA)."""
    w = jnp.zeros((W_ROWS, V_PAD), jnp.float32)
    w = w.at[WHH1_R:WHH1_R + HIDDEN_1, :HIDDEN_1].set(whh1)
    w = w.at[WIH2_R:WIH2_R + HIDDEN_1, :HIDDEN_2].set(wih2)
    w = w.at[WHH2_R:WHH2_R + HIDDEN_2, :HIDDEN_2].set(whh2)
    w = w.at[WIH1_R:WIH1_R + EMBED_DIM, :HIDDEN_1].set(wih1)
    w = w.at[B1_R:B1_R + 1, :HIDDEN_1].set(b1)
    w = w.at[B2_R:B2_R + 1, :HIDDEN_2].set(b2)
    w = w.at[WOUT_R:WOUT_R + HIDDEN_2, :VOCAB_SIZE].set(wout)
    w = w.at[BOUT_R:BOUT_R + 1, :VOCAB_SIZE].set(bout)
    return w


def rnn_forward(x_idx, params):
    """x_idx: int32 (B, T) token indices.
    Returns (logits (B,T,V), h1 (1,B,H1), h2 (1,B,H2))."""
    (emb, wih1, whh1, b1, wih2, whh2, b2, wout, bout) = params
    B, T = x_idx.shape

    # Embedding gather is glue (tiny table); the RNN/GELU/Linear hot path is in-kernel.
    x_emb = emb[x_idx]                                 # (B, T, E)
    x_flat = x_emb.reshape(B * T, EMBED_DIM)           # free reshape, no transpose

    w_pack = _pack_weights(wih1, whh1, b1, wih2, whh2, b2, wout, bout)

    vmem = pl.BlockSpec(memory_space=pltpu.MemorySpace.VMEM)
    out = pl.pallas_call(
        functools.partial(rnn_kernel, B=B, T=T),
        out_shape=jax.ShapeDtypeStruct((B * T + B, V_PAD), jnp.float32),
        in_specs=[vmem, vmem],
        out_specs=vmem,
    )(x_flat, w_pack)

    logits = out[:B * T, :VOCAB_SIZE].reshape(B, T, VOCAB_SIZE)   # row-major b*T+t
    h1 = out[B * T:, :HIDDEN_1][None]                             # (1, B, H1)
    h2 = out[B * T:, HIDDEN_1:HIDDEN_1 + HIDDEN_2][None]          # (1, B, H2)
    return logits, h1, h2


def init_params(key):
    ks = jax.random.split(key, 9)
    k1 = 1.0 / math.sqrt(HIDDEN_1)
    k2 = 1.0 / math.sqrt(HIDDEN_2)
    emb = jax.random.normal(ks[0], (INPUT_SIZE, EMBED_DIM), jnp.float32)
    wih1 = jax.random.uniform(ks[1], (EMBED_DIM, HIDDEN_1), jnp.float32, -k1, k1)
    whh1 = jax.random.uniform(ks[2], (HIDDEN_1, HIDDEN_1), jnp.float32, -k1, k1)
    # NOTE: biases are generated pre-fused (b_ih + b_hh).  When porting real
    # PyTorch weights, sum the two bias vectors per RNN layer explicitly.
    b1 = jax.random.uniform(ks[3], (1, HIDDEN_1), jnp.float32, -k1, k1)
    wih2 = jax.random.uniform(ks[4], (HIDDEN_1, HIDDEN_2), jnp.float32, -k2, k2)
    whh2 = jax.random.uniform(ks[5], (HIDDEN_2, HIDDEN_2), jnp.float32, -k2, k2)
    b2 = jax.random.uniform(ks[6], (1, HIDDEN_2), jnp.float32, -k2, k2)
    wout = jax.random.uniform(ks[7], (HIDDEN_2, VOCAB_SIZE), jnp.float32, -k2, k2)
    bout = jax.random.uniform(ks[8], (1, VOCAB_SIZE), jnp.float32, -k2, k2)
    return (emb, wih1, whh1, b1, wih2, whh2, b2, wout, bout)


def rnn_forward_ref(x_idx, params):
    """Pure-JAX reference mirroring PyTorch semantics (exact erf GELU)."""
    (emb, wih1, whh1, b1, wih2, whh2, b2, wout, bout) = params
    x_emb = emb[x_idx]                                 # (B, T, E)
    B, T, _ = x_emb.shape

    def scan1(h, x_t):
        h = jnp.tanh(x_t @ wih1 + h @ whh1 + b1)
        return h, h

    h1_f, o1 = lax.scan(scan1, jnp.zeros((B, HIDDEN_1), jnp.float32),
                        jnp.transpose(x_emb, (1, 0, 2)))
    g = _gelu_exact(o1)                                # (T, B, H1)

    def scan2(h, g_t):
        h = jnp.tanh(g_t @ wih2 + h @ whh2 + b2)
        return h, h

    h2_f, o2 = lax.scan(scan2, jnp.zeros((B, HIDDEN_2), jnp.float32), g)
    logits = o2 @ wout + bout                          # (T, B, V)
    return jnp.transpose(logits, (1, 0, 2)), h1_f[None], h2_f[None]


if __name__ == "__main__":
    key = jax.random.PRNGKey(0)
    pkey, xkey = jax.random.split(key)
    params = init_params(pkey)

    B, T = 2, 8
    x = jax.random.randint(xkey, (B, T), 0, INPUT_SIZE, dtype=jnp.int32)

    out, h1, h2 = jax.block_until_ready(jax.jit(rnn_forward)(x, params))
    out_r, h1_r, h2_r = rnn_forward_ref(x, params)

    assert out.shape == (B, T, VOCAB_SIZE)
    assert h1.shape == (1, B, HIDDEN_1)
    assert h2.shape == (1, B, HIDDEN_2)
    assert jnp.allclose(out, out_r, atol=1e-4, rtol=1e-4)
    assert jnp.allclose(h1, h1_r, atol=1e-4, rtol=1e-4)
    assert jnp.allclose(h2, h2_r, atol=1e-4, rtol=1e-4)

    print("KERNEL_OK")
</pallas_src>

<mosaic_0001>
module attributes {stable_mosaic.version = 11 : i64} {
  func.func @rnn_kernel(%arg0: memref<16x3xf32, #tpu.memory_space<vmem>>, %arg1: memref<40x128xf32, #tpu.memory_space<vmem>>, %arg2: memref<18x128xf32, #tpu.memory_space<vmem>>) attributes {dimension_semantics = [], scalar_prefetch = 0 : i64, scratch_operands = 0 : i64, tpu.core_type = #tpu.core_type<tc>} {
    %c24 = arith.constant 24 : index
    %c0 = arith.constant 0 : index
    %0 = vector.load %arg1[%c24, %c0] : memref<40x128xf32, #tpu.memory_space<vmem>>, vector<3x8xf32>
    %c0_0 = arith.constant 0 : index
    %c0_1 = arith.constant 0 : index
    %1 = vector.load %arg1[%c0_0, %c0_1] : memref<40x128xf32, #tpu.memory_space<vmem>>, vector<8x8xf32>
    %c27 = arith.constant 27 : index
    %c0_2 = arith.constant 0 : index
    %2 = vector.load %arg1[%c27, %c0_2] : memref<40x128xf32, #tpu.memory_space<vmem>>, vector<1x8xf32>
    %c8 = arith.constant 8 : index
    %c0_3 = arith.constant 0 : index
    %3 = vector.load %arg1[%c8, %c0_3] : memref<40x128xf32, #tpu.memory_space<vmem>>, vector<8x4xf32>
    %c16 = arith.constant 16 : index
    %c0_4 = arith.constant 0 : index
    %4 = vector.load %arg1[%c16, %c0_4] : memref<40x128xf32, #tpu.memory_space<vmem>>, vector<4x4xf32>
    %c28 = arith.constant 28 : index
    %c0_5 = arith.constant 0 : index
    %5 = vector.load %arg1[%c28, %c0_5] : memref<40x128xf32, #tpu.memory_space<vmem>>, vector<1x4xf32>
    %c32 = arith.constant 32 : index
    %c0_6 = arith.constant 0 : index
    %6 = vector.load %arg1[%c32, %c0_6] : memref<40x128xf32, #tpu.memory_space<vmem>>, vector<4x128xf32>
    %c36 = arith.constant 36 : index
    %c0_7 = arith.constant 0 : index
    %7 = vector.load %arg1[%c36, %c0_7] : memref<40x128xf32, #tpu.memory_space<vmem>>, vector<1x128xf32>
    %c0_8 = arith.constant 0 : index
    %c0_9 = arith.constant 0 : index
    %8 = vector.load %arg0[%c0_8, %c0_9] : memref<16x3xf32, #tpu.memory_space<vmem>>, vector<16x3xf32>
    %cst = arith.constant dense<0.000000e+00> : vector<16x8xf32>
    %9 = tpu.matmul %8, %0, %cst {dimension_numbers = #tpu.dot_dimension_numbers<[1], [0], [0], [1], [0, 0, 1, 1], [], []>} : vector<16x3xf32>, vector<3x8xf32>, vector<16x8xf32> -> vector<16x8xf32>
    %10 = vector.broadcast %2 : vector<1x8xf32> to vector<16x8xf32>
    %11 = arith.addf %9, %10 : vector<16x8xf32>
    %12 = vector.shape_cast %11 : vector<16x8xf32> to vector<2x8x8xf32>
    %cst_10 = arith.constant 0.000000e+00 : f32
    %13 = vector.broadcast %cst_10 : f32 to vector<2x8xf32>
    %14 = vector.extract_strided_slice %12 {offsets = [0, 0, 0], sizes = [2, 1, 8], strides = [1, 1, 1]} : vector<2x8x8xf32> to vector<2x1x8xf32>
    %15 = vector.shape_cast %14 : vector<2x1x8xf32> to vector<2x8xf32>
    %cst_11 = arith.constant dense<0.000000e+00> : vector<2x8xf32>
    %16 = tpu.matmul %13, %1, %cst_11 {dimension_numbers = #tpu.dot_dimension_numbers<[1], [0], [0], [1], [0, 0, 1, 1], [], []>} : vector<2x8xf32>, vector<8x8xf32>, vector<2x8xf32> -> vector<2x8xf32>
    %17 = arith.addf %15, %16 : vector<2x8xf32>
    %18 = math.tanh %17 : vector<2x8xf32>
    %19 = vector.extract_strided_slice %12 {offsets = [0, 1, 0], sizes = [2, 1, 8], strides = [1, 1, 1]} : vector<2x8x8xf32> to vector<2x1x8xf32>
    %20 = vector.shape_cast %19 : vector<2x1x8xf32> to vector<2x8xf32>
    %cst_12 = arith.constant dense<0.000000e+00> : vector<2x8xf32>
    %21 = tpu.matmul %18, %1, %cst_12 {dimension_numbers = #tpu.dot_dimension_numbers<[1], [0], [0], [1], [0, 0, 1, 1], [], []>} : vector<2x8xf32>, vector<8x8xf32>, vector<2x8xf32> -> vector<2x8xf32>
    %22 = arith.addf %20, %21 : vector<2x8xf32>
    %23 = math.tanh %22 : vector<2x8xf32>
    %24 = vector.extract_strided_slice %12 {offsets = [0, 2, 0], sizes = [2, 1, 8], strides = [1, 1, 1]} : vector<2x8x8xf32> to vector<2x1x8xf32>
    %25 = vector.shape_cast %24 : vector<2x1x8xf32> to vector<2x8xf32>
    %cst_13 = arith.constant dense<0.000000e+00> : vector<2x8xf32>
    %26 = tpu.matmul %23, %1, %cst_13 {dimension_numbers = #tpu.dot_dimension_numbers<[1], [0], [0], [1], [0, 0, 1, 1], [], []>} : vector<2x8xf32>, vector<8x8xf32>, vector<2x8xf32> -> vector<2x8xf32>
    %27 = arith.addf %25, %26 : vector<2x8xf32>
    %28 = math.tanh %27 : vector<2x8xf32>
    %29 = vector.extract_strided_slice %12 {offsets = [0, 3, 0], sizes = [2, 1, 8], strides = [1, 1, 1]} : vector<2x8x8xf32> to vector<2x1x8xf32>
    %30 = vector.shape_cast %29 : vector<2x1x8xf32> to vector<2x8xf32>
    %cst_14 = arith.constant dense<0.000000e+00> : vector<2x8xf32>
    %31 = tpu.matmul %28, %1, %cst_14 {dimension_numbers = #tpu.dot_dimension_numbers<[1], [0], [0], [1], [0, 0, 1, 1], [], []>} : vector<2x8xf32>, vector<8x8xf32>, vector<2x8xf32> -> vector<2x8xf32>
    %32 = arith.addf %30, %31 : vector<2x8xf32>
    %33 = math.tanh %32 : vector<2x8xf32>
    %34 = vector.extract_strided_slice %12 {offsets = [0, 4, 0], sizes = [2, 1, 8], strides = [1, 1, 1]} : vector<2x8x8xf32> to vector<2x1x8xf32>
    %35 = vector.shape_cast %34 : vector<2x1x8xf32> to vector<2x8xf32>
    %cst_15 = arith.constant dense<0.000000e+00> : vector<2x8xf32>
    %36 = tpu.matmul %33, %1, %cst_15 {dimension_numbers = #tpu.dot_dimension_numbers<[1], [0], [0], [1], [0, 0, 1, 1], [], []>} : vector<2x8xf32>, vector<8x8xf32>, vector<2x8xf32> -> vector<2x8xf32>
    %37 = arith.addf %35, %36 : vector<2x8xf32>
    %38 = math.tanh %37 : vector<2x8xf32>
    %39 = vector.extract_strided_slice %12 {offsets = [0, 5, 0], sizes = [2, 1, 8], strides = [1, 1, 1]} : vector<2x8x8xf32> to vector<2x1x8xf32>
    %40 = vector.shape_cast %39 : vector<2x1x8xf32> to vector<2x8xf32>
    %cst_16 = arith.constant dense<0.000000e+00> : vector<2x8xf32>
    %41 = tpu.matmul %38, %1, %cst_16 {dimension_numbers = #tpu.dot_dimension_numbers<[1], [0], [0], [1], [0, 0, 1, 1], [], []>} : vector<2x8xf32>, vector<8x8xf32>, vector<2x8xf32> -> vector<2x8xf32>
    %42 = arith.addf %40, %41 : vector<2x8xf32>
    %43 = math.tanh %42 : vector<2x8xf32>
    %44 = vector.extract_strided_slice %12 {offsets = [0, 6, 0], sizes = [2, 1, 8], strides = [1, 1, 1]} : vector<2x8x8xf32> to vector<2x1x8xf32>
    %45 = vector.shape_cast %44 : vector<2x1x8xf32> to vector<2x8xf32>
    %cst_17 = arith.constant dense<0.000000e+00> : vector<2x8xf32>
    %46 = tpu.matmul %43, %1, %cst_17 {dimension_numbers = #tpu.dot_dimension_numbers<[1], [0], [0], [1], [0, 0, 1, 1], [], []>} : vector<2x8xf32>, vector<8x8xf32>, vector<2x8xf32> -> vector<2x8xf32>
    %47 = arith.addf %45, %46 : vector<2x8xf32>
    %48 = math.tanh %47 : vector<2x8xf32>
    %49 = vector.extract_strided_slice %12 {offsets = [0, 7, 0], sizes = [2, 1, 8], strides = [1, 1, 1]} : vector<2x8x8xf32> to vector<2x1x8xf32>
    %50 = vector.shape_cast %49 : vector<2x1x8xf32> to vector<2x8xf32>
    %cst_18 = arith.constant dense<0.000000e+00> : vector<2x8xf32>
    %51 = tpu.matmul %48, %1, %cst_18 {dimension_numbers = #tpu.dot_dimension_numbers<[1], [0], [0], [1], [0, 0, 1, 1], [], []>} : vector<2x8xf32>, vector<8x8xf32>, vector<2x8xf32> -> vector<2x8xf32>
    %52 = arith.addf %50, %51 : vector<2x8xf32>
    %53 = math.tanh %52 : vector<2x8xf32>
    %54 = vector.shape_cast %18 : vector<2x8xf32> to vector<2x1x8xf32>
    %55 = vector.shape_cast %23 : vector<2x8xf32> to vector<2x1x8xf32>
    %56 = vector.shape_cast %28 : vector<2x8xf32> to vector<2x1x8xf32>
    %57 = vector.shape_cast %33 : vector<2x8xf32> to vector<2x1x8xf32>
    %58 = vector.shape_cast %38 : vector<2x8xf32> to vector<2x1x8xf32>
    %59 = vector.shape_cast %43 : vector<2x8xf32> to vector<2x1x8xf32>
    %60 = vector.shape_cast %48 : vector<2x8xf32> to vector<2x1x8xf32>
    %61 = vector.shape_cast %53 : vector<2x8xf32> to vector<2x1x8xf32>
    %62 = tpu.concatenate %54, %55, %56, %57, %58, %59, %60, %61 in 1 : vector<2x1x8xf32>, vector<2x1x8xf32>, vector<2x1x8xf32>, vector<2x1x8xf32>, vector<2x1x8xf32>, vector<2x1x8xf32>, vector<2x1x8xf32>, vector<2x1x8xf32> -> vector<2x8x8xf32>
    %63 = vector.shape_cast %62 : vector<2x8x8xf32> to vector<16x8xf32>
    %cst_19 = arith.constant 5.000000e-01 : f32
    %64 = vector.broadcast %cst_19 : f32 to vector<16x8xf32>
    %65 = arith.mulf %64, %63 : vector<16x8xf32>
    %cst_20 = arith.constant 0.707106769 : f32
    %66 = vector.broadcast %cst_20 : f32 to vector<16x8xf32>
    %67 = arith.mulf %63, %66 : vector<16x8xf32>
    %68 = math.absf %67 : vector<16x8xf32>
    %cst_21 = arith.constant 0.327591091 : f32
    %69 = vector.broadcast %cst_21 : f32 to vector<16x8xf32>
    %70 = arith.mulf %69, %68 : vector<16x8xf32>
    %cst_22 = arith.constant 1.000000e+00 : f32
    %71 = vector.broadcast %cst_22 : f32 to vector<16x8xf32>
    %72 = arith.addf %71, %70 : vector<16x8xf32>
    %cst_23 = arith.constant 1.000000e+00 : f32
    %73 = vector.broadcast %cst_23 : f32 to vector<16x8xf32>
    %74 = arith.divf %73, %72 : vector<16x8xf32>
    %cst_24 = arith.constant 1.06140542 : f32
    %75 = vector.broadcast %cst_24 : f32 to vector<16x8xf32>
    %76 = arith.mulf %75, %74 : vector<16x8xf32>
    %cst_25 = arith.constant -1.45315206 : f32
    %77 = vector.broadcast %cst_25 : f32 to vector<16x8xf32>
    %78 = arith.addf %76, %77 : vector<16x8xf32>
    %79 = arith.mulf %78, %74 : vector<16x8xf32>
    %cst_26 = arith.constant 1.42141378 : f32
    %80 = vector.broadcast %cst_26 : f32 to vector<16x8xf32>
    %81 = arith.addf %79, %80 : vector<16x8xf32>
    %82 = arith.mulf %81, %74 : vector<16x8xf32>
    %cst_27 = arith.constant -0.284496725 : f32
    %83 = vector.broadcast %cst_27 : f32 to vector<16x8xf32>
    %84 = arith.addf %82, %83 : vector<16x8xf32>
    %85 = arith.mulf %84, %74 : vector<16x8xf32>
    %cst_28 = arith.constant 0.254829586 : f32
    %86 = vector.broadcast %cst_28 : f32 to vector<16x8xf32>
    %87 = arith.addf %85, %86 : vector<16x8xf32>
    %88 = arith.mulf %87, %74 : vector<16x8xf32>
    %cst_29 = arith.constant 0.000000e+00 : f32
    %89 = vector.broadcast %cst_29 : f32 to vector<16x8xf32>
    %90 = arith.subf %89, %68 : vector<16x8xf32>
    %91 = arith.mulf %90, %68 : vector<16x8xf32>
    %92 = math.exp %91 : vector<16x8xf32>
    %93 = arith.mulf %88, %92 : vector<16x8xf32>
    %cst_30 = arith.constant 1.000000e+00 : f32
    %94 = vector.broadcast %cst_30 : f32 to vector<16x8xf32>
    %95 = arith.subf %94, %93 : vector<16x8xf32>
    %cst_31 = arith.constant 0.000000e+00 : f32
    %96 = vector.broadcast %cst_31 : f32 to vector<16x8xf32>
    %97 = arith.cmpf olt, %67, %96 : vector<16x8xf32>
    %cst_32 = arith.constant 0.000000e+00 : f32
    %98 = vector.broadcast %cst_32 : f32 to vector<16x8xf32>
    %99 = arith.subf %98, %95 : vector<16x8xf32>
    %100 = arith.select %97, %99, %95 : vector<16x8xi1>, vector<16x8xf32>
    %cst_33 = arith.constant 1.000000e+00 : f32
    %101 = vector.broadcast %cst_33 : f32 to vector<16x8xf32>
    %102 = arith.addf %101, %100 : vector<16x8xf32>
    %103 = arith.mulf %65, %102 : vector<16x8xf32>
    %cst_34 = arith.constant dense<0.000000e+00> : vector<16x4xf32>
    %104 = tpu.matmul %103, %3, %cst_34 {dimension_numbers = #tpu.dot_dimension_numbers<[1], [0], [0], [1], [0, 0, 1, 1], [], []>} : vector<16x8xf32>, vector<8x4xf32>, vector<16x4xf32> -> vector<16x4xf32>
    %105 = vector.broadcast %5 : vector<1x4xf32> to vector<16x4xf32>
    %106 = arith.addf %104, %105 : vector<16x4xf32>
    %107 = vector.shape_cast %106 : vector<16x4xf32> to vector<2x8x4xf32>
    %cst_35 = arith.constant 0.000000e+00 : f32
    %108 = vector.broadcast %cst_35 : f32 to vector<2x4xf32>
    %109 = vector.extract_strided_slice %107 {offsets = [0, 0, 0], sizes = [2, 1, 4], strides = [1, 1, 1]} : vector<2x8x4xf32> to vector<2x1x4xf32>
    %110 = vector.shape_cast %109 : vector<2x1x4xf32> to vector<2x4xf32>
    %cst_36 = arith.constant dense<0.000000e+00> : vector<2x4xf32>
    %111 = tpu.matmul %108, %4, %cst_36 {dimension_numbers = #tpu.dot_dimension_numbers<[1], [0], [0], [1], [0, 0, 1, 1], [], []>} : vector<2x4xf32>, vector<4x4xf32>, vector<2x4xf32> -> vector<2x4xf32>
    %112 = arith.addf %110, %111 : vector<2x4xf32>
    %113 = math.tanh %112 : vector<2x4xf32>
    %114 = vector.extract_strided_slice %107 {offsets = [0, 1, 0], sizes = [2, 1, 4], strides = [1, 1, 1]} : vector<2x8x4xf32> to vector<2x1x4xf32>
    %115 = vector.shape_cast %114 : vector<2x1x4xf32> to vector<2x4xf32>
    %cst_37 = arith.constant dense<0.000000e+00> : vector<2x4xf32>
    %116 = tpu.matmul %113, %4, %cst_37 {dimension_numbers = #tpu.dot_dimension_numbers<[1], [0], [0], [1], [0, 0, 1, 1], [], []>} : vector<2x4xf32>, vector<4x4xf32>, vector<2x4xf32> -> vector<2x4xf32>
    %117 = arith.addf %115, %116 : vector<2x4xf32>
    %118 = math.tanh %117 : vector<2x4xf32>
    %119 = vector.extract_strided_slice %107 {offsets = [0, 2, 0], sizes = [2, 1, 4], strides = [1, 1, 1]} : vector<2x8x4xf32> to vector<2x1x4xf32>
    %120 = vector.shape_cast %119 : vector<2x1x4xf32> to vector<2x4xf32>
    %cst_38 = arith.constant dense<0.000000e+00> : vector<2x4xf32>
    %121 = tpu.matmul %118, %4, %cst_38 {dimension_numbers = #tpu.dot_dimension_numbers<[1], [0], [0], [1], [0, 0, 1, 1], [], []>} : vector<2x4xf32>, vector<4x4xf32>, vector<2x4xf32> -> vector<2x4xf32>
    %122 = arith.addf %120, %121 : vector<2x4xf32>
    %123 = math.tanh %122 : vector<2x4xf32>
    %124 = vector.extract_strided_slice %107 {offsets = [0, 3, 0], sizes = [2, 1, 4], strides = [1, 1, 1]} : vector<2x8x4xf32> to vector<2x1x4xf32>
    %125 = vector.shape_cast %124 : vector<2x1x4xf32> to vector<2x4xf32>
    %cst_39 = arith.constant dense<0.000000e+00> : vector<2x4xf32>
    %126 = tpu.matmul %123, %4, %cst_39 {dimension_numbers = #tpu.dot_dimension_numbers<[1], [0], [0], [1], [0, 0, 1, 1], [], []>} : vector<2x4xf32>, vector<4x4xf32>, vector<2x4xf32> -> vector<2x4xf32>
    %127 = arith.addf %125, %126 : vector<2x4xf32>
    %128 = math.tanh %127 : vector<2x4xf32>
    %129 = vector.extract_strided_slice %107 {offsets = [0, 4, 0], sizes = [2, 1, 4], strides = [1, 1, 1]} : vector<2x8x4xf32> to vector<2x1x4xf32>
    %130 = vector.shape_cast %129 : vector<2x1x4xf32> to vector<2x4xf32>
    %cst_40 = arith.constant dense<0.000000e+00> : vector<2x4xf32>
    %131 = tpu.matmul %128, %4, %cst_40 {dimension_numbers = #tpu.dot_dimension_numbers<[1], [0], [0], [1], [0, 0, 1, 1], [], []>} : vector<2x4xf32>, vector<4x4xf32>, vector<2x4xf32> -> vector<2x4xf32>
    %132 = arith.addf %130, %131 : vector<2x4xf32>
    %133 = math.tanh %132 : vector<2x4xf32>
    %134 = vector.extract_strided_slice %107 {offsets = [0, 5, 0], sizes = [2, 1, 4], strides = [1, 1, 1]} : vector<2x8x4xf32> to vector<2x1x4xf32>
    %135 = vector.shape_cast %134 : vector<2x1x4xf32> to vector<2x4xf32>
    %cst_41 = arith.constant dense<0.000000e+00> : vector<2x4xf32>
    %136 = tpu.matmul %133, %4, %cst_41 {dimension_numbers = #tpu.dot_dimension_numbers<[1], [0], [0], [1], [0, 0, 1, 1], [], []>} : vector<2x4xf32>, vector<4x4xf32>, vector<2x4xf32> -> vector<2x4xf32>
    %137 = arith.addf %135, %136 : vector<2x4xf32>
    %138 = math.tanh %137 : vector<2x4xf32>
    %139 = vector.extract_strided_slice %107 {offsets = [0, 6, 0], sizes = [2, 1, 4], strides = [1, 1, 1]} : vector<2x8x4xf32> to vector<2x1x4xf32>
    %140 = vector.shape_cast %139 : vector<2x1x4xf32> to vector<2x4xf32>
    %cst_42 = arith.constant dense<0.000000e+00> : vector<2x4xf32>
    %141 = tpu.matmul %138, %4, %cst_42 {dimension_numbers = #tpu.dot_dimension_numbers<[1], [0], [0], [1], [0, 0, 1, 1], [], []>} : vector<2x4xf32>, vector<4x4xf32>, vector<2x4xf32> -> vector<2x4xf32>
    %142 = arith.addf %140, %141 : vector<2x4xf32>
    %143 = math.tanh %142 : vector<2x4xf32>
    %144 = vector.extract_strided_slice %107 {offsets = [0, 7, 0], sizes = [2, 1, 4], strides = [1, 1, 1]} : vector<2x8x4xf32> to vector<2x1x4xf32>
    %145 = vector.shape_cast %144 : vector<2x1x4xf32> to vector<2x4xf32>
    %cst_43 = arith.constant dense<0.000000e+00> : vector<2x4xf32>
    %146 = tpu.matmul %143, %4, %cst_43 {dimension_numbers = #tpu.dot_dimension_numbers<[1], [0], [0], [1], [0, 0, 1, 1], [], []>} : vector<2x4xf32>, vector<4x4xf32>, vector<2x4xf32> -> vector<2x4xf32>
    %147 = arith.addf %145, %146 : vector<2x4xf32>
    %148 = math.tanh %147 : vector<2x4xf32>
    %149 = vector.shape_cast %113 : vector<2x4xf32> to vector<2x1x4xf32>
    %150 = vector.shape_cast %118 : vector<2x4xf32> to vector<2x1x4xf32>
    %151 = vector.shape_cast %123 : vector<2x4xf32> to vector<2x1x4xf32>
    %152 = vector.shape_cast %128 : vector<2x4xf32> to vector<2x1x4xf32>
    %153 = vector.shape_cast %133 : vector<2x4xf32> to vector<2x1x4xf32>
    %154 = vector.shape_cast %138 : vector<2x4xf32> to vector<2x1x4xf32>
    %155 = vector.shape_cast %143 : vector<2x4xf32> to vector<2x1x4xf32>
    %156 = vector.shape_cast %148 : vector<2x4xf32> to vector<2x1x4xf32>
    %157 = tpu.concatenate %149, %150, %151, %152, %153, %154, %155, %156 in 1 : vector<2x1x4xf32>, vector<2x1x4xf32>, vector<2x1x4xf32>, vector<2x1x4xf32>, vector<2x1x4xf32>, vector<2x1x4xf32>, vector<2x1x4xf32>, vector<2x1x4xf32> -> vector<2x8x4xf32>
    %158 = vector.shape_cast %157 : vector<2x8x4xf32> to vector<16x4xf32>
    %cst_44 = arith.constant dense<0.000000e+00> : vector<16x128xf32>
    %159 = tpu.matmul %158, %6, %cst_44 {dimension_numbers = #tpu.dot_dimension_numbers<[1], [0], [0], [1], [0, 0, 1, 1], [], []>} : vector<16x4xf32>, vector<4x128xf32>, vector<16x128xf32> -> vector<16x128xf32>
    %160 = vector.broadcast %7 : vector<1x128xf32> to vector<16x128xf32>
    %161 = arith.addf %159, %160 : vector<16x128xf32>
    %cst_45 = arith.constant 0.000000e+00 : f32
    %162 = vector.broadcast %cst_45 : f32 to vector<2x116xf32>
    %163 = tpu.concatenate %53, %148, %162 in 1 : vector<2x8xf32>, vector<2x4xf32>, vector<2x116xf32> -> vector<2x128xf32>
    %c0_46 = arith.constant 0 : index
    %c0_47 = arith.constant 0 : index
    %164 = vector.load %arg2[%c0_46, %c0_47] : memref<18x128xf32, #tpu.memory_space<vmem>>, vector<16x128xf32>
    tpu.vector_store %arg2[%c0_46, %c0_47], %161 {strides = array<i32>} : memref<18x128xf32, #tpu.memory_space<vmem>>, vector<16x128xf32>,
    %c16_48 = arith.constant 16 : index
    %c0_49 = arith.constant 0 : index
    %165 = vector.load %arg2[%c16_48, %c0_49] : memref<18x128xf32, #tpu.memory_space<vmem>>, vector<2x128xf32>
    tpu.vector_store %arg2[%c16_48, %c0_49], %163 {strides = array<i32>} : memref<18x128xf32, #tpu.memory_space<vmem>>, vector<2x128xf32>,
    return
  }
}

</mosaic_0001>

<llo_original>
// kernel: rnn_forward.1
$region0: #{rnn_forward.1}
  #allocation0 [shape = 'u32[]', space=smem, size = 0x4, offset = 0x4, fixed_abs, tag = 'smem constant byte address 0x4 - core index']
  #allocation1 [shape = 'u32[144,128]{1,0:T(1,128)}', space=vmem, size = 0x12000, scoped, tag = 'internal scratch']
  %s0 = inlined_call_operand.vmem [shape: f32[16,3], index: 0, kind: input, shape index: {}]
  %s1 = inlined_call_operand.vmem [shape: f32[40,128], index: 1, kind: input, shape index: {}]
  %s2 = inlined_call_operand.vmem [shape: f32[18,128], index: 2, kind: output, shape index: {}]
  %s3 = sld [smem:[#allocation0]]
  $region18: #{rnn_forward.1} parent=0
    _
  %s5 = ssub.s32 1, %s3
  %s6 = scalar_select 0, %s5, %s3
  // Predicated region
  $region2: #{rnn_forward.1} parent=0 // pred_check
    _
  $region3: #{rnn_forward.1} parent=0 // pred_check_branch
    %8 = sbr.rel (0) target = $region5
  $region4: #{rnn_forward.1} parent=0 // pred_region
    _
  $region5: #{rnn_forward.1} parent=0 // pred_fallthru
    _
  // Predicated region
  $region6: #{rnn_forward.1} parent=0 // pred_check
    _
  $region7: #{rnn_forward.1} parent=0 // pred_check_branch
    %10 = sbr.rel (0) target = $region9
  $region8: #{rnn_forward.1} parent=0 // pred_region
    _
  $region9: #{rnn_forward.1} parent=0 // pred_fallthru
    _
  %v11 = vld [vmem:[%s1 + $0x18] sm:$0x7]
  %v12 = vld [vmem:[%s1] sm:$0xff]
  %v13 = vld [vmem:[%s1 + $0x1b] sm:$0x1]
  %v14 = vld [vmem:[%s1 + $0x8] sm:$0xff]
  %v15 = vld [vmem:[%s1 + $0x10] sm:$0xf]
  %v16 = vld [vmem:[%s1 + $0x1c] sm:$0x1]
  %v17 = vld [vmem:[%s1 + $0x20] sm:$0xf]
  %v18 = vld [vmem:[%s1 + $0x24] sm:$0x1]
  %v19 = vld [vmem:[%s0] sm:$0xff]
  %v20 = vld [vmem:[%s0 + $0x8] sm:$0xff]
  %v21 = vlaneseq
  %v22 = vshrl.u32 %v21, 7
  %v23 = vsub.s32 0, %v22
  %v24 = vrot.slane %v13, %v23
  %vm25 = vcmask 23552
  %v27 = vsel %vm25, %v19, 0
  %v30 = vsel %vm25, %v20, 0
  %vm32 = vcmask 1042432
  %v34 = vsel %vm32, %v11, 0
  %36 = vmatprep.subr.mxu0 0.0
  %37 = vmatpush1.msra.mxu0 0.0
  %38 = vmatprep.subr.mxu0 0.0
  %39 = vmatpush1.msra.mxu0 0.0
  %40 = vmatprep.subr.mxu0 0.0
  %41 = vmatpush1.msra.mxu0 0.0
  %42 = vmatprep.subr.mxu0 0.0
  %43 = vmatpush1.msra.mxu0 0.0
  %44 = vmatprep.subr.mxu0 0.0
  %45 = vmatpush1.msra.mxu0 0.0
  %46 = vmatprep.subr.mxu0 0.0
  %47 = vmatpush1.msra.mxu0 0.0
  %48 = vmatprep.subr.mxu0 0.0
  %49 = vmatpush1.msra.mxu0 0.0
  %50 = vmatprep.subr.mxu0 0.0
  %51 = vmatpush1.msra.mxu0 0.0
  %52 = vmatprep.subr.mxu0 0.0
  %53 = vmatpush1.msra.mxu0 0.0
  %54 = vmatprep.subr.mxu0 0.0
  %55 = vmatpush1.msra.mxu0 0.0
  %56 = vmatprep.subr.mxu0 0.0
  %57 = vmatpush1.msra.mxu0 0.0
  %58 = vmatprep.subr.mxu0 0.0
  %59 = vmatpush1.msra.mxu0 0.0
  %60 = vmatprep.subr.mxu0 0.0
  %61 = vmatpush1.msra.mxu0 0.0
  %62 = vmatprep.subr.mxu0 0.0
  %63 = vmatpush1.msra.mxu0 0.0
  %64 = vmatprep.subr.mxu0 0.0
  %65 = vmatpush1.msra.mxu0 0.0
  %66 = vmatprep.subr.mxu0 0.0
  %67 = vmatpush1.msra.mxu0 %v34
  %68 = vmatprep.subr.mxu0 0.0
  %69 = vmatpush2.msra.mxu0 0.0
  %70 = vmatprep.subr.mxu0 0.0
  %71 = vmatpush2.msra.mxu0 0.0
  %72 = vmatprep.subr.mxu0 0.0
  %73 = vmatpush2.msra.mxu0 0.0
  %74 = vmatprep.subr.mxu0 0.0
  %75 = vmatpush2.msra.mxu0 0.0
  %76 = vmatprep.subr.mxu0 0.0
  %77 = vmatpush2.msra.mxu0 0.0
  %78 = vmatprep.subr.mxu0 0.0
  %79 = vmatpush2.msra.mxu0 0.0
  %80 = vmatprep.subr.mxu0 0.0
  %81 = vmatpush2.msra.mxu0 0.0
  %82 = vmatprep.subr.mxu0 0.0
  %83 = vmatpush2.msra.mxu0 0.0
  %84 = vmatprep.subr.mxu0 0.0
  %85 = vmatpush2.msra.mxu0 0.0
  %86 = vmatprep.subr.mxu0 0.0
  %87 = vmatpush2.msra.mxu0 0.0
  %88 = vmatprep.subr.mxu0 0.0
  %89 = vmatpush2.msra.mxu0 0.0
  %90 = vmatprep.subr.mxu0 0.0
  %91 = vmatpush2.msra.mxu0 0.0
  %92 = vmatprep.subr.mxu0 0.0
  %93 = vmatpush2.msra.mxu0 0.0
  %94 = vmatprep.subr.mxu0 0.0
  %95 = vmatpush2.msra.mxu0 0.0
  %96 = vmatprep.subr.mxu0 0.0
  %97 = vmatpush2.msra.mxu0 0.0
  %98 = vmatprep.subr.mxu0 0.0
  %99 = vmatpush2.msra.mxu0 0.0
  %100 = vmatprep.mubr.f32.mxu0 0.0
  %101 = vmatmul.mubr.f32.gmra.mxu0 %v27
  %v102 = vpop.f32.mrf.mxu0
  %v103 = vadd.f32 %v24, %v102
  %v104 = vpop.f32.mrf.mxu0
  %105 = vmatprep.mubr.f32.mxu0 0.0
  %106 = vmatmul.mubr.f32.gmra.mxu0 %v30
  %v107 = vpop.f32.mrf.mxu0
  %v108 = vadd.f32 %v24, %v107
  %v109 = vpop.f32.mrf.mxu0
  %110 = vdwg.mxu0
  %vm111 = vcmask 64512
  %v113 = vsel %vm111, 0.0, 0
  %115 = vmatprep.subr.mxu0 0.0
  %116 = vmatpush1.msra.mxu0 0.0
  %117 = vmatprep.subr.mxu0 0.0
  %118 = vmatpush1.msra.mxu0 0.0
  %119 = vmatprep.subr.mxu0 0.0
  %120 = vmatpush1.msra.mxu0 0.0
  %121 = vmatprep.subr.mxu0 0.0
  %122 = vmatpush1.msra.mxu0 0.0
  %123 = vmatprep.subr.mxu0 0.0
  %124 = vmatpush1.msra.mxu0 0.0
  %125 = vmatprep.subr.mxu0 0.0
  %126 = vmatpush1.msra.mxu0 0.0
  %127 = vmatprep.subr.mxu0 0.0
  %128 = vmatpush1.msra.mxu0 0.0
  %129 = vmatprep.subr.mxu0 0.0
  %130 = vmatpush1.msra.mxu0 0.0
  %131 = vmatprep.subr.mxu0 0.0
  %132 = vmatpush1.msra.mxu0 0.0
  %133 = vmatprep.subr.mxu0 0.0
  %134 = vmatpush1.msra.mxu0 0.0
  %135 = vmatprep.subr.mxu0 0.0
  %136 = vmatpush1.msra.mxu0 0.0
  %137 = vmatprep.subr.mxu0 0.0
  %138 = vmatpush1.msra.mxu0 0.0
  %139 = vmatprep.subr.mxu0 0.0
  %140 = vmatpush1.msra.mxu0 0.0
  %141 = vmatprep.subr.mxu0 0.0
  %142 = vmatpush1.msra.mxu0 0.0
  %143 = vmatprep.subr.mxu0 0.0
  %144 = vmatpush1.msra.mxu0 0.0
  %145 = vmatprep.subr.mxu0 0.0
  %146 = vmatpush1.msra.mxu0 %v12
  %147 = vmatprep.subr.mxu0 0.0
  %148 = vmatpush2.msra.mxu0 0.0
  %149 = vmatprep.subr.mxu0 0.0
  %150 = vmatpush2.msra.mxu0 0.0
  %151 = vmatprep.subr.mxu0 0.0
  %152 = vmatpush2.msra.mxu0 0.0
  %153 = vmatprep.subr.mxu0 0.0
  %154 = vmatpush2.msra.mxu0 0.0
  %155 = vmatprep.subr.mxu0 0.0
  %156 = vmatpush2.msra.mxu0 0.0
  %157 = vmatprep.subr.mxu0 0.0
  %158 = vmatpush2.msra.mxu0 0.0
  %159 = vmatprep.subr.mxu0 0.0
  %160 = vmatpush2.msra.mxu0 0.0
  %161 = vmatprep.subr.mxu0 0.0
  %162 = vmatpush2.msra.mxu0 0.0
  %163 = vmatprep.subr.mxu0 0.0
  %164 = vmatpush2.msra.mxu0 0.0
  %165 = vmatprep.subr.mxu0 0.0
  %166 = vmatpush2.msra.mxu0 0.0
  %167 = vmatprep.subr.mxu0 0.0
  %168 = vmatpush2.msra.mxu0 0.0
  %169 = vmatprep.subr.mxu0 0.0
  %170 = vmatpush2.msra.mxu0 0.0
  %171 = vmatprep.subr.mxu0 0.0
  %172 = vmatpush2.msra.mxu0 0.0
  %173 = vmatprep.subr.mxu0 0.0
  %174 = vmatpush2.msra.mxu0 0.0
  %175 = vmatprep.subr.mxu0 0.0
  %176 = vmatpush2.msra.mxu0 0.0
  %177 = vmatprep.subr.mxu0 0.0
  %178 = vmatpush2.msra.mxu0 0.0
  %179 = vmatprep.mubr.f32.mxu0 0.0
  %180 = vmatmul.mubr.f32.gmra.mxu0 %v113
  %v181 = vpop.f32.mrf.mxu0
  %v182 = vadd.f32 0.0, %v181
  %v183 = vpop.f32.mrf.mxu0
  %184 = vdwg.mxu0
  %v186 = vrot.slane %v182, 1
  %v189 = vadd.f32 %v103, %v182
  %v190 = vadd.f32 %v108, %v186
  %v191 = vtanh.pop %v189
  %v192 = vtanh.pop %v190
  %v195 = vrot.slane %v192, 7
  %vm196 = vcmask 1041409
  %v197 = vsel %vm196, %v195, %v191
  %v198 = vsel %vm111, %v197, 0
  %200 = vmatprep.subr.mxu0 0.0
  %201 = vmatpush1.msra.mxu0 0.0
  %202 = vmatprep.subr.mxu0 0.0
  %203 = vmatpush1.msra.mxu0 0.0
  %204 = vmatprep.subr.mxu0 0.0
  %205 = vmatpush1.msra.mxu0 0.0
  %206 = vmatprep.subr.mxu0 0.0
  %207 = vmatpush1.msra.mxu0 0.0
  %208 = vmatprep.subr.mxu0 0.0
  %209 = vmatpush1.msra.mxu0 0.0
  %210 = vmatprep.subr.mxu0 0.0
  %211 = vmatpush1.msra.mxu0 0.0
  %212 = vmatprep.subr.mxu0 0.0
  %213 = vmatpush1.msra.mxu0 0.0
  %214 = vmatprep.subr.mxu0 0.0
  %215 = vmatpush1.msra.mxu0 0.0
  %216 = vmatprep.subr.mxu0 0.0
  %217 = vmatpush1.msra.mxu0 0.0
  %218 = vmatprep.subr.mxu0 0.0
  %219 = vmatpush1.msra.mxu0 0.0
  %220 = vmatprep.subr.mxu0 0.0
  %221 = vmatpush1.msra.mxu0 0.0
  %222 = vmatprep.subr.mxu0 0.0
  %223 = vmatpush1.msra.mxu0 0.0
  %224 = vmatprep.subr.mxu0 0.0
  %225 = vmatpush1.msra.mxu0 0.0
  %226 = vmatprep.subr.mxu0 0.0
  %227 = vmatpush1.msra.mxu0 0.0
  %228 = vmatprep.subr.mxu0 0.0
  %229 = vmatpush1.msra.mxu0 0.0
  %230 = vmatprep.subr.mxu0 0.0
  %231 = vmatpush1.msra.mxu0 %v12
  %232 = vmatprep.subr.mxu0 0.0
  %233 = vmatpush2.msra.mxu0 0.0
  %234 = vmatprep.subr.mxu0 0.0
  %235 = vmatpush2.msra.mxu0 0.0
  %236 = vmatprep.subr.mxu0 0.0
  %237 = vmatpush2.msra.mxu0 0.0
  %238 = vmatprep.subr.mxu0 0.0
  %239 = vmatpush2.msra.mxu0 0.0
  %240 = vmatprep.subr.mxu0 0.0
  %241 = vmatpush2.msra.mxu0 0.0
  %242 = vmatprep.subr.mxu0 0.0
  %243 = vmatpush2.msra.mxu0 0.0
  %244 = vmatprep.subr.mxu0 0.0
  %245 = vmatpush2.msra.mxu0 0.0
  %246 = vmatprep.subr.mxu0 0.0
  %247 = vmatpush2.msra.mxu0 0.0
  %248 = vmatprep.subr.mxu0 0.0
  %249 = vmatpush2.msra.mxu0 0.0
  %250 = vmatprep.subr.mxu0 0.0
  %251 = vmatpush2.msra.mxu0 0.0
  %252 = vmatprep.subr.mxu0 0.0
  %253 = vmatpush2.msra.mxu0 0.0
  %254 = vmatprep.subr.mxu0 0.0
  %255 = vmatpush2.msra.mxu0 0.0
  %256 = vmatprep.subr.mxu0 0.0
  %257 = vmatpush2.msra.mxu0 0.0
  %258 = vmatprep.subr.mxu0 0.0
  %259 = vmatpush2.msra.mxu0 0.0
  %260 = vmatprep.subr.mxu0 0.0
  %261 = vmatpush2.msra.mxu0 0.0
  %262 = vmatprep.subr.mxu0 0.0
  %263 = vmatpush2.msra.mxu0 0.0
  %264 = vmatprep.mubr.f32.mxu0 0.0
  %265 = vmatmul.mubr.f32.gmra.mxu0 %v198
  %v266 = vpop.f32.mrf.mxu0
  %v267 = vadd.f32 0.0, %v266
  %v268 = vpop.f32.mrf.mxu0
  %269 = vdwg.mxu0
  %v271 = vrot.slane %v267, 7
  %v274 = vadd.f32 %v103, %v271
  %v275 = vadd.f32 %v108, %v267
  %v276 = vtanh.pop %v274
  %v277 = vtanh.pop %v275
  %v280 = vrot.slane %v276, 1
  %v281 = vsel %vm196, %v277, %v280
  %v282 = vsel %vm111, %v281, 0
  %284 = vmatprep.subr.mxu0 0.0
  %285 = vmatpush1.msra.mxu0 0.0
  %286 = vmatprep.subr.mxu0 0.0
  %287 = vmatpush1.msra.mxu0 0.0
  %288 = vmatprep.subr.mxu0 0.0
  %289 = vmatpush1.msra.mxu0 0.0
  %290 = vmatprep.subr.mxu0 0.0
  %291 = vmatpush1.msra.mxu0 0.0
  %292 = vmatprep.subr.mxu0 0.0
  %293 = vmatpush1.msra.mxu0 0.0
  %294 = vmatprep.subr.mxu0 0.0
  %295 = vmatpush1.msra.mxu0 0.0
  %296 = vmatprep.subr.mxu0 0.0
  %297 = vmatpush1.msra.mxu0 0.0
  %298 = vmatprep.subr.mxu0 0.0
  %299 = vmatpush1.msra.mxu0 0.0
  %300 = vmatprep.subr.mxu0 0.0
  %301 = vmatpush1.msra.mxu0 0.0
  %302 = vmatprep.subr.mxu0 0.0
  %303 = vmatpush1.msra.mxu0 0.0
  %304 = vmatprep.subr.mxu0 0.0
  %305 = vmatpush1.msra.mxu0 0.0
  %306 = vmatprep.subr.mxu0 0.0
  %307 = vmatpush1.msra.mxu0 0.0
  %308 = vmatprep.subr.mxu0 0.0
  %309 = vmatpush1.msra.mxu0 0.0
  %310 = vmatprep.subr.mxu0 0.0
  %311 = vmatpush1.msra.mxu0 0.0
  %312 = vmatprep.subr.mxu0 0.0
  %313 = vmatpush1.msra.mxu0 0.0
  %314 = vmatprep.subr.mxu0 0.0
  %315 = vmatpush1.msra.mxu0 %v12
  %316 = vmatprep.subr.mxu0 0.0
  %317 = vmatpush2.msra.mxu0 0.0
  %318 = vmatprep.subr.mxu0 0.0
  %319 = vmatpush2.msra.mxu0 0.0
  %320 = vmatprep.subr.mxu0 0.0
  %321 = vmatpush2.msra.mxu0 0.0
  %322 = vmatprep.subr.mxu0 0.0
  %323 = vmatpush2.msra.mxu0 0.0
  %324 = vmatprep.subr.mxu0 0.0
  %325 = vmatpush2.msra.mxu0 0.0
  %326 = vmatprep.subr.mxu0 0.0
  %327 = vmatpush2.msra.mxu0 0.0
  %328 = vmatprep.subr.mxu0 0.0
  %329 = vmatpush2.msra.mxu0 0.0
  %330 = vmatprep.subr.mxu0 0.0
  %331 = vmatpush2.msra.mxu0 0.0
  %332 = vmatprep.subr.mxu0 0.0
  %333 = vmatpush2.msra.mxu0 0.0
  %334 = vmatprep.subr.mxu0 0.0
  %335 = vmatpush2.msra.mxu0 0.0
  %336 = vmatprep.subr.mxu0 0.0
  %337 = vmatpush2.msra.mxu0 0.0
  %338 = vmatprep.subr.mxu0 0.0
  %339 = vmatpush2.msra.mxu0 0.0
  %340 = vmatprep.subr.mxu0 0.0
  %341 = vmatpush2.msra.mxu0 0.0
  %342 = vmatprep.subr.mxu0 0.0
  %343 = vmatpush2.msra.mxu0 0.0
  %344 = vmatprep.subr.mxu0 0.0
  %345 = vmatpush2.msra.mxu0 0.0
  %346 = vmatprep.subr.mxu0 0.0
  %347 = vmatpush2.msra.mxu0 0.0
  %348 = vmatprep.mubr.f32.mxu0 0.0
  %349 = vmatmul.mubr.f32.gmra.mxu0 %v282
  %v350 = vpop.f32.mrf.mxu0
  %v351 = vadd.f32 0.0, %v350
  %v352 = vpop.f32.mrf.mxu0
  %353 = vdwg.mxu0
  %v355 = vrot.slane %v351, 6
  %v356 = vrot.slane %v351, 7
  %v359 = vadd.f32 %v103, %v355
  %v360 = vadd.f32 %v108, %v356
  %v361 = vtanh.pop %v359
  %v362 = vtanh.pop %v360
  %v365 = vrot.slane %v361, 2
  %v366 = vrot.slane %v362, 1
  %v367 = vsel %vm196, %v366, %v365
  %v368 = vsel %vm111, %v367, 0
  %370 = vmatprep.subr.mxu0 0.0
  %371 = vmatpush1.msra.mxu0 0.0
  %372 = vmatprep.subr.mxu0 0.0
  %373 = vmatpush1.msra.mxu0 0.0
  %374 = vmatprep.subr.mxu0 0.0
  %375 = vmatpush1.msra.mxu0 0.0
  %376 = vmatprep.subr.mxu0 0.0
  %377 = vmatpush1.msra.mxu0 0.0
  %378 = vmatprep.subr.mxu0 0.0
  %379 = vmatpush1.msra.mxu0 0.0
  %380 = vmatprep.subr.mxu0 0.0
  %381 = vmatpush1.msra.mxu0 0.0
  %382 = vmatprep.subr.mxu0 0.0
  %383 = vmatpush1.msra.mxu0 0.0
  %384 = vmatprep.subr.mxu0 0.0
  %385 = vmatpush1.msra.mxu0 0.0
  %386 = vmatprep.subr.mxu0 0.0
  %387 = vmatpush1.msra.mxu0 0.0
  %388 = vmatprep.subr.mxu0 0.0
  %389 = vmatpush1.msra.mxu0 0.0
  %390 = vmatprep.subr.mxu0 0.0
  %391 = vmatpush1.msra.mxu0 0.0
  %392 = vmatprep.subr.mxu0 0.0
  %393 = vmatpush1.msra.mxu0 0.0
  %394 = vmatprep.subr.mxu0 0.0
  %395 = vmatpush1.msra.mxu0 0.0
  %396 = vmatprep.subr.mxu0 0.0
  %397 = vmatpush1.msra.mxu0 0.0
  %398 = vmatprep.subr.mxu0 0.0
  %399 = vmatpush1.msra.mxu0 0.0
  %400 = vmatprep.subr.mxu0 0.0
  %401 = vmatpush1.msra.mxu0 %v12
  %402 = vmatprep.subr.mxu0 0.0
  %403 = vmatpush2.msra.mxu0 0.0
  %404 = vmatprep.subr.mxu0 0.0
  %405 = vmatpush2.msra.mxu0 0.0
  %406 = vmatprep.subr.mxu0 0.0
  %407 = vmatpush2.msra.mxu0 0.0
  %408 = vmatprep.subr.mxu0 0.0
  %409 = vmatpush2.msra.mxu0 0.0
  %410 = vmatprep.subr.mxu0 0.0
  %411 = vmatpush2.msra.mxu0 0.0
  %412 = vmatprep.subr.mxu0 0.0
  %413 = vmatpush2.msra.mxu0 0.0
  %414 = vmatprep.subr.mxu0 0.0
  %415 = vmatpush2.msra.mxu0 0.0
  %416 = vmatprep.subr.mxu0 0.0
  %417 = vmatpush2.msra.mxu0 0.0
  %418 = vmatprep.subr.mxu0 0.0
  %419 = vmatpush2.msra.mxu0 0.0
  %420 = vmatprep.subr.mxu0 0.0
  %421 = vmatpush2.msra.mxu0 0.0
  %422 = vmatprep.subr.mxu0 0.0
  %423 = vmatpush2.msra.mxu0 0.0
  %424 = vmatprep.subr.mxu0 0.0
  %425 = vmatpush2.msra.mxu0 0.0
  %426 = vmatprep.subr.mxu0 0.0
  %427 = vmatpush2.msra.mxu0 0.0
  %428 = vmatprep.subr.mxu0 0.0
  %429 = vmatpush2.msra.mxu0 0.0
  %430 = vmatprep.subr.mxu0 0.0
  %431 = vmatpush2.msra.mxu0 0.0
  %432 = vmatprep.subr.mxu0 0.0
  %433 = vmatpush2.msra.mxu0 0.0
  %434 = vmatprep.mubr.f32.mxu0 0.0
  %435 = vmatmul.mubr.f32.gmra.mxu0 %v368
  %v436 = vpop.f32.mrf.mxu0
  %v437 = vadd.f32 0.0, %v436
  %v438 = vpop.f32.mrf.mxu0
  %439 = vdwg.mxu0
  %v441 = vrot.slane %v437, 5
  %v442 = vrot.slane %v437, 6
  %v445 = vadd.f32 %v103, %v441
  %v446 = vadd.f32 %v108, %v442
  %v447 = vtanh.pop %v445
  %v448 = vtanh.pop %v446
  %v451 = vrot.slane %v447, 3
  %v452 = vrot.slane %v448, 2
  %v453 = vsel %vm196, %v452, %v451
  %v454 = vsel %vm111, %v453, 0
  %456 = vmatprep.subr.mxu0 0.0
  %457 = vmatpush1.msra.mxu0 0.0
  %458 = vmatprep.subr.mxu0 0.0
  %459 = vmatpush1.msra.mxu0 0.0
  %460 = vmatprep.subr.mxu0 0.0
  %461 = vmatpush1.msra.mxu0 0.0
  %462 = vmatprep.subr.mxu0 0.0
  %463 = vmatpush1.msra.mxu0 0.0
  %464 = vmatprep.subr.mxu0 0.0
  %465 = vmatpush1.msra.mxu0 0.0
  %466 = vmatprep.subr.mxu0 0.0
  %467 = vmatpush1.msra.mxu0 0.0
  %468 = vmatprep.subr.mxu0 0.0
  %469 = vmatpush1.msra.mxu0 0.0
  %470 = vmatprep.subr.mxu0 0.0
  %471 = vmatpush1.msra.mxu0 0.0
  %472 = vmatprep.subr.mxu0 0.0
  %473 = vmatpush1.msra.mxu0 0.0
  %474 = vmatprep.subr.mxu0 0.0
  %475 = vmatpush1.msra.mxu0 0.0
  %476 = vmatprep.subr.mxu0 0.0
  %477 = vmatpush1.msra.mxu0 0.0
  %478 = vmatprep.subr.mxu0 0.0
  %479 = vmatpush1.msra.mxu0 0.0
  %480 = vmatprep.subr.mxu0 0.0
  %481 = vmatpush1.msra.mxu0 0.0
  %482 = vmatprep.subr.mxu0 0.0
  %483 = vmatpush1.msra.mxu0 0.0
  %484 = vmatprep.subr.mxu0 0.0
  %485 = vmatpush1.msra.mxu0 0.0
  %486 = vmatprep.subr.mxu0 0.0
  %487 = vmatpush1.msra.mxu0 %v12
  %488 = vmatprep.subr.mxu0 0.0
  %489 = vmatpush2.msra.mxu0 0.0
  %490 = vmatprep.subr.mxu0 0.0
  %491 = vmatpush2.msra.mxu0 0.0
  %492 = vmatprep.subr.mxu0 0.0
  %493 = vmatpush2.msra.mxu0 0.0
  %494 = vmatprep.subr.mxu0 0.0
  %495 = vmatpush2.msra.mxu0 0.0
  %496 = vmatprep.subr.mxu0 0.0
  %497 = vmatpush2.msra.mxu0 0.0
  %498 = vmatprep.subr.mxu0 0.0
  %499 = vmatpush2.msra.mxu0 0.0
  %500 = vmatprep.subr.mxu0 0.0
  %501 = vmatpush2.msra.mxu0 0.0
  %502 = vmatprep.subr.mxu0 0.0
  %503 = vmatpush2.msra.mxu0 0.0
  %504 = vmatprep.subr.mxu0 0.0
  %505 = vmatpush2.msra.mxu0 0.0
  %506 = vmatprep.subr.mxu0 0.0
  %507 = vmatpush2.msra.mxu0 0.0
  %508 = vmatprep.subr.mxu0 0.0
  %509 = vmatpush2.msra.mxu0 0.0
  %510 = vmatprep.subr.mxu0 0.0
  %511 = vmatpush2.msra.mxu0 0.0
  %512 = vmatprep.subr.mxu0 0.0
  %513 = vmatpush2.msra.mxu0 0.0
  %514 = vmatprep.subr.mxu0 0.0
  %515 = vmatpush2.msra.mxu0 0.0
  %516 = vmatprep.subr.mxu0 0.0
  %517 = vmatpush2.msra.mxu0 0.0
  %518 = vmatprep.subr.mxu0 0.0
  %519 = vmatpush2.msra.mxu0 0.0
  %520 = vmatprep.mubr.f32.mxu0 0.0
  %521 = vmatmul.mubr.f32.gmra.mxu0 %v454
  %v522 = vpop.f32.mrf.mxu0
  %v523 = vadd.f32 0.0, %v522
  %v524 = vpop.f32.mrf.mxu0
  %525 = vdwg.mxu0
  %v527 = vrot.slane %v523, 4
  %v528 = vrot.slane %v523, 5
  %v531 = vadd.f32 %v103, %v527
  %v532 = vadd.f32 %v108, %v528
  %v533 = vtanh.pop %v531
  %v534 = vtanh.pop %v532
  %v537 = vrot.slane %v533, 4
  %v538 = vrot.slane %v534, 3
  %v539 = vsel %vm196, %v538, %v537
  %v540 = vsel %vm111, %v539, 0
  %542 = vmatprep.subr.mxu0 0.0
  %543 = vmatpush1.msra.mxu0 0.0
  %544 = vmatprep.subr.mxu0 0.0
  %545 = vmatpush1.msra.mxu0 0.0
  %546 = vmatprep.subr.mxu0 0.0
  %547 = vmatpush1.msra.mxu0 0.0
  %548 = vmatprep.subr.mxu0 0.0
  %549 = vmatpush1.msra.mxu0 0.0
  %550 = vmatprep.subr.mxu0 0.0
  %551 = vmatpush1.msra.mxu0 0.0
  %552 = vmatprep.subr.mxu0 0.0
  %553 = vmatpush1.msra.mxu0 0.0
  %554 = vmatprep.subr.mxu0 0.0
  %555 = vmatpush1.msra.mxu0 0.0
  %556 = vmatprep.subr.mxu0 0.0
  %557 = vmatpush1.msra.mxu0 0.0
  %558 = vmatprep.subr.mxu0 0.0
  %559 = vmatpush1.msra.mxu0 0.0
  %560 = vmatprep.subr.mxu0 0.0
  %561 = vmatpush1.msra.mxu0 0.0
  %562 = vmatprep.subr.mxu0 0.0
  %563 = vmatpush1.msra.mxu0 0.0
  %564 = vmatprep.subr.mxu0 0.0
  %565 = vmatpush1.msra.mxu0 0.0
  %566 = vmatprep.subr.mxu0 0.0
  %567 = vmatpush1.msra.mxu0 0.0
  %568 = vmatprep.subr.mxu0 0.0
  %569 = vmatpush1.msra.mxu0 0.0
  %570 = vmatprep.subr.mxu0 0.0
  %571 = vmatpush1.msra.mxu0 0.0
  %572 = vmatprep.subr.mxu0 0.0
  %573 = vmatpush1.msra.mxu0 %v12
  %574 = vmatprep.subr.mxu0 0.0
  %575 = vmatpush2.msra.mxu0 0.0
  %576 = vmatprep.subr.mxu0 0.0
  %577 = vmatpush2.msra.mxu0 0.0
  %578 = vmatprep.subr.mxu0 0.0
  %579 = vmatpush2.msra.mxu0 0.0
  %580 = vmatprep.subr.mxu0 0.0
  %581 = vmatpush2.msra.mxu0 0.0
  %582 = vmatprep.subr.mxu0 0.0
  %583 = vmatpush2.msra.mxu0 0.0
  %584 = vmatprep.subr.mxu0 0.0
  %585 = vmatpush2.msra.mxu0 0.0
  %586 = vmatprep.subr.mxu0 0.0
  %587 = vmatpush2.msra.mxu0 0.0
  %588 = vmatprep.subr.mxu0 0.0
  %589 = vmatpush2.msra.mxu0 0.0
  %590 = vmatprep.subr.mxu0 0.0
  %591 = vmatpush2.msra.mxu0 0.0
  %592 = vmatprep.subr.mxu0 0.0
  %593 = vmatpush2.msra.mxu0 0.0
  %594 = vmatprep.subr.mxu0 0.0
  %595 = vmatpush2.msra.mxu0 0.0
  %596 = vmatprep.subr.mxu0 0.0
  %597 = vmatpush2.msra.mxu0 0.0
  %598 = vmatprep.subr.mxu0 0.0
  %599 = vmatpush2.msra.mxu0 0.0
  %600 = vmatprep.subr.mxu0 0.0
  %601 = vmatpush2.msra.mxu0 0.0
  %602 = vmatprep.subr.mxu0 0.0
  %603 = vmatpush2.msra.mxu0 0.0
  %604 = vmatprep.subr.mxu0 0.0
  %605 = vmatpush2.msra.mxu0 0.0
  %606 = vmatprep.mubr.f32.mxu0 0.0
  %607 = vmatmul.mubr.f32.gmra.mxu0 %v540
  %v608 = vpop.f32.mrf.mxu0
  %v609 = vadd.f32 0.0, %v608
  %v610 = vpop.f32.mrf.mxu0
  %611 = vdwg.mxu0
  %v613 = vrot.slane %v609, 3
  %v614 = vrot.slane %v609, 4
  %v617 = vadd.f32 %v103, %v613
  %v618 = vadd.f32 %v108, %v614
  %v619 = vtanh.pop %v617
  %v620 = vtanh.pop %v618
  %v623 = vrot.slane %v619, 5
  %v624 = vrot.slane %v620, 4
  %v625 = vsel %vm196, %v624, %v623
  %v626 = vsel %vm111, %v625, 0
  %628 = vmatprep.subr.mxu0 0.0
  %629 = vmatpush1.msra.mxu0 0.0
  %630 = vmatprep.subr.mxu0 0.0
  %631 = vmatpush1.msra.mxu0 0.0
  %632 = vmatprep.subr.mxu0 0.0
  %633 = vmatpush1.msra.mxu0 0.0
  %634 = vmatprep.subr.mxu0 0.0
  %635 = vmatpush1.msra.mxu0 0.0
  %636 = vmatprep.subr.mxu0 0.0
  %637 = vmatpush1.msra.mxu0 0.0
  %638 = vmatprep.subr.mxu0 0.0
  %639 = vmatpush1.msra.mxu0 0.0
  %640 = vmatprep.subr.mxu0 0.0
  %641 = vmatpush1.msra.mxu0 0.0
  %642 = vmatprep.subr.mxu0 0.0
  %643 = vmatpush1.msra.mxu0 0.0
  %644 = vmatprep.subr.mxu0 0.0
  %645 = vmatpush1.msra.mxu0 0.0
  %646 = vmatprep.subr.mxu0 0.0
  %647 = vmatpush1.msra.mxu0 0.0
  %648 = vmatprep.subr.mxu0 0.0
  %649 = vmatpush1.msra.mxu0 0.0
  %650 = vmatprep.subr.mxu0 0.0
  %651 = vmatpush1.msra.mxu0 0.0
  %652 = vmatprep.subr.mxu0 0.0
  %653 = vmatpush1.msra.mxu0 0.0
  %654 = vmatprep.subr.mxu0 0.0
  %655 = vmatpush1.msra.mxu0 0.0
  %656 = vmatprep.subr.mxu0 0.0
  %657 = vmatpush1.msra.mxu0 0.0
  %658 = vmatprep.subr.mxu0 0.0
  %659 = vmatpush1.msra.mxu0 %v12
  %660 = vmatprep.subr.mxu0 0.0
  %661 = vmatpush2.msra.mxu0 0.0
  %662 = vmatprep.subr.mxu0 0.0
  %663 = vmatpush2.msra.mxu0 0.0
  %664 = vmatprep.subr.mxu0 0.0
  %665 = vmatpush2.msra.mxu0 0.0
  %666 = vmatprep.subr.mxu0 0.0
  %667 = vmatpush2.msra.mxu0 0.0
  %668 = vmatprep.subr.mxu0 0.0
  %669 = vmatpush2.msra.mxu0 0.0
  %670 = vmatprep.subr.mxu0 0.0
  %671 = vmatpush2.msra.mxu0 0.0
  %672 = vmatprep.subr.mxu0 0.0
  %673 = vmatpush2.msra.mxu0 0.0
  %674 = vmatprep.subr.mxu0 0.0
  %675 = vmatpush2.msra.mxu0 0.0
  %676 = vmatprep.subr.mxu0 0.0
  %677 = vmatpush2.msra.mxu0 0.0
  %678 = vmatprep.subr.mxu0 0.0
  %679 = vmatpush2.msra.mxu0 0.0
  %680 = vmatprep.subr.mxu0 0.0
  %681 = vmatpush2.msra.mxu0 0.0
  %682 = vmatprep.subr.mxu0 0.0
  %683 = vmatpush2.msra.mxu0 0.0
  %684 = vmatprep.subr.mxu0 0.0
  %685 = vmatpush2.msra.mxu0 0.0
  %686 = vmatprep.subr.mxu0 0.0
  %687 = vmatpush2.msra.mxu0 0.0
  %688 = vmatprep.subr.mxu0 0.0
  %689 = vmatpush2.msra.mxu0 0.0
  %690 = vmatprep.subr.mxu0 0.0
  %691 = vmatpush2.msra.mxu0 0.0
  %692 = vmatprep.mubr.f32.mxu0 0.0
  %693 = vmatmul.mubr.f32.gmra.mxu0 %v626
  %v694 = vpop.f32.mrf.mxu0
  %v695 = vadd.f32 0.0, %v694
  %v696 = vpop.f32.mrf.mxu0
  %697 = vdwg.mxu0
  %v699 = vrot.slane %v695, 2
  %v700 = vrot.slane %v695, 3
  %v703 = vadd.f32 %v103, %v699
  %v704 = vadd.f32 %v108, %v700
  %v705 = vtanh.pop %v703
  %v706 = vtanh.pop %v704
  %v709 = vrot.slane %v705, 6
  %v710 = vrot.slane %v706, 5
  %v711 = vsel %vm196, %v710, %v709
  %v712 = vsel %vm111, %v711, 0
  %714 = vmatprep.subr.mxu0 0.0
  %715 = vmatpush1.msra.mxu0 0.0
  %716 = vmatprep.subr.mxu0 0.0
  %717 = vmatpush1.msra.mxu0 0.0
  %718 = vmatprep.subr.mxu0 0.0
  %719 = vmatpush1.msra.mxu0 0.0
  %720 = vmatprep.subr.mxu0 0.0
  %721 = vmatpush1.msra.mxu0 0.0
  %722 = vmatprep.subr.mxu0 0.0
  %723 = vmatpush1.msra.mxu0 0.0
  %724 = vmatprep.subr.mxu0 0.0
  %725 = vmatpush1.msra.mxu0 0.0
  %726 = vmatprep.subr.mxu0 0.0
  %727 = vmatpush1.msra.mxu0 0.0
  %728 = vmatprep.subr.mxu0 0.0
  %729 = vmatpush1.msra.mxu0 0.0
  %730 = vmatprep.subr.mxu0 0.0
  %731 = vmatpush1.msra.mxu0 0.0
  %732 = vmatprep.subr.mxu0 0.0
  %733 = vmatpush1.msra.mxu0 0.0
  %734 = vmatprep.subr.mxu0 0.0
  %735 = vmatpush1.msra.mxu0 0.0
  %736 = vmatprep.subr.mxu0 0.0
  %737 = vmatpush1.msra.mxu0 0.0
  %738 = vmatprep.subr.mxu0 0.0
  %739 = vmatpush1.msra.mxu0 0.0
  %740 = vmatprep.subr.mxu0 0.0
  %741 = vmatpush1.msra.mxu0 0.0
  %742 = vmatprep.subr.mxu0 0.0
  %743 = vmatpush1.msra.mxu0 0.0
  %744 = vmatprep.subr.mxu0 0.0
  %745 = vmatpush1.msra.mxu0 %v12
  %746 = vmatprep.subr.mxu0 0.0
  %747 = vmatpush2.msra.mxu0 0.0
  %748 = vmatprep.subr.mxu0 0.0
  %749 = vmatpush2.msra.mxu0 0.0
  %750 = vmatprep.subr.mxu0 0.0
  %751 = vmatpush2.msra.mxu0 0.0
  %752 = vmatprep.subr.mxu0 0.0
  %753 = vmatpush2.msra.mxu0 0.0
  %754 = vmatprep.subr.mxu0 0.0
  %755 = vmatpush2.msra.mxu0 0.0
  %756 = vmatprep.subr.mxu0 0.0
  %757 = vmatpush2.msra.mxu0 0.0
  %758 = vmatprep.subr.mxu0 0.0
  %759 = vmatpush2.msra.mxu0 0.0
  %760 = vmatprep.subr.mxu0 0.0
  %761 = vmatpush2.msra.mxu0 0.0
  %762 = vmatprep.subr.mxu0 0.0
  %763 = vmatpush2.msra.mxu0 0.0
  %764 = vmatprep.subr.mxu0 0.0
  %765 = vmatpush2.msra.mxu0 0.0
  %766 = vmatprep.subr.mxu0 0.0
  %767 = vmatpush2.msra.mxu0 0.0
  %768 = vmatprep.subr.mxu0 0.0
  %769 = vmatpush2.msra.mxu0 0.0
  %770 = vmatprep.subr.mxu0 0.0
  %771 = vmatpush2.msra.mxu0 0.0
  %772 = vmatprep.subr.mxu0 0.0
  %773 = vmatpush2.msra.mxu0 0.0
  %774 = vmatprep.subr.mxu0 0.0
  %775 = vmatpush2.msra.mxu0 0.0
  %776 = vmatprep.subr.mxu0 0.0
  %777 = vmatpush2.msra.mxu0 0.0
  %778 = vmatprep.mubr.f32.mxu0 0.0
  %779 = vmatmul.mubr.f32.gmra.mxu0 %v712
  %v780 = vpop.f32.mrf.mxu0
  %v781 = vadd.f32 0.0, %v780
  %v782 = vpop.f32.mrf.mxu0
  %783 = vdwg.mxu0
  %v785 = vrot.slane %v781, 1
  %v786 = vrot.slane %v781, 2
  %v789 = vadd.f32 %v103, %v785
  %v790 = vadd.f32 %v108, %v786
  %v791 = vtanh.pop %v789
  %v792 = vtanh.pop %v790
  %vm793 = vcmask 1040384
  %v794 = vsel %vm793, %v191, %v276
  %v795 = vsel %vm793, %v192, %v277
  %vm796 = vcmask 1041408
  %v797 = vsel %vm796, %v794, %v361
  %v798 = vsel %vm796, %v795, %v362
  %v799 = vsel %vm32, %v797, %v447
  %v800 = vsel %vm32, %v798, %v448
  %vm801 = vcmask 1043456
  %v802 = vsel %vm801, %v799, %v533
  %v803 = vsel %vm801, %v800, %v534
  %vm804 = vcmask 1044480
  %v805 = vsel %vm804, %v802, %v619
  %v806 = vsel %vm804, %v803, %v620
  %vm807 = vcmask 1045504
  %v808 = vsel %vm807, %v805, %v705
  %v809 = vsel %vm807, %v806, %v706
  %vm810 = vcmask 1046528
  %v811 = vsel %vm810, %v808, %v791
  %v812 = vsel %vm810, %v809, %v792
  %v813 = vmul.f32 %v811, 0.5
  %v814 = vmul.f32 %v812, 0.5
  %v815 = vmul.f32 %v811, 0.70710677
  %v816 = vmul.f32 %v812, 0.70710677
  %v817 = vand.u32 2147483647, %v815
  %v818 = vand.u32 2147483647, %v816
  %v819 = vmul.f32 %v817, 0.3275911
  %v820 = vmul.f32 %v818, 0.3275911
  %v821 = vadd.f32 %v819, 1.0
  %v822 = vadd.f32 %v820, 1.0
  %v823 = vrcp.pop %v821
  %v824 = vmul.f32 1.0, %v823
  %v825 = vrcp.pop %v822
  %v826 = vmul.f32 1.0, %v825
  %v827 = vmul.f32 %v824, 1.0614054
  %v828 = vmul.f32 %v826, 1.0614054
  %v829 = vadd.f32 %v827, -1.4531521
  %v830 = vadd.f32 %v828, -1.4531521
  %v831 = vmul.f32 %v829, %v824
  %v832 = vmul.f32 %v830, %v826
  %v833 = vadd.f32 %v831, 1.4214138
  %v834 = vadd.f32 %v832, 1.4214138
  %v835 = vmul.f32 %v833, %v824
  %v836 = vmul.f32 %v834, %v826
  %v837 = vadd.f32 %v835, -0.28449672
  %v838 = vadd.f32 %v836, -0.28449672
  %v839 = vmul.f32 %v837, %v824
  %v840 = vmul.f32 %v838, %v826
  %v841 = vadd.f32 %v839, 0.2548296
  %v842 = vadd.f32 %v840, 0.2548296
  %v843 = vmul.f32 %v841, %v824
  %v844 = vmul.f32 %v842, %v826
  %v845 = vsub.f32 0.0, %v817
  %v846 = vsub.f32 0.0, %v818
  %v847 = vmul.f32 %v845, %v817
  %v848 = vmul.f32 %v846, %v818
  %v849 = vmul.f32 %v847, 1.442695
  %v850 = vpow.pop %v849
  %v851 = vmul.f32 %v848, 1.442695
  %v852 = vpow.pop %v851
  %v853 = vmul.f32 %v843, %v850
  %v854 = vmul.f32 %v844, %v852
  %v855 = vsub.f32 1.0, %v853
  %v856 = vsub.f32 1.0, %v854
  %vm857 = vcmp.lt.f32.partialorder %v815, 0.0
  %vm858 = vcmp.lt.f32.partialorder %v816, 0.0
  %v859 = vsub.f32 0.0, %v855
  %v860 = vsub.f32 0.0, %v856
  %v861 = vsel %vm857, %v859, %v855
  %v862 = vsel %vm858, %v860, %v856
  %v863 = vadd.f32 %v861, 1.0
  %v864 = vadd.f32 %v862, 1.0
  %v865 = vmul.f32 %v813, %v863
  %v866 = vmul.f32 %v814, %v864
  %v867 = vlaneseq
  %v868 = vshrl.u32 %v867, 7
  %v869 = vsub.s32 0, %v868
  %v870 = vrot.slane %v16, %v869
  %v872 = vsel %vm111, %v865, 0
  %v875 = vsel %vm111, %v866, 0
  %877 = vmatprep.subr.mxu0 0.0
  %878 = vmatpush1.msra.mxu0 0.0
  %879 = vmatprep.subr.mxu0 0.0
  %880 = vmatpush1.msra.mxu0 0.0
  %881 = vmatprep.subr.mxu0 0.0
  %882 = vmatpush1.msra.mxu0 0.0
  %883 = vmatprep.subr.mxu0 0.0
  %884 = vmatpush1.msra.mxu0 0.0
  %885 = vmatprep.subr.mxu0 0.0
  %886 = vmatpush1.msra.mxu0 0.0
  %887 = vmatprep.subr.mxu0 0.0
  %888 = vmatpush1.msra.mxu0 0.0
  %889 = vmatprep.subr.mxu0 0.0
  %890 = vmatpush1.msra.mxu0 0.0
  %891 = vmatprep.subr.mxu0 0.0
  %892 = vmatpush1.msra.mxu0 0.0
  %893 = vmatprep.subr.mxu0 0.0
  %894 = vmatpush1.msra.mxu0 0.0
  %895 = vmatprep.subr.mxu0 0.0
  %896 = vmatpush1.msra.mxu0 0.0
  %897 = vmatprep.subr.mxu0 0.0
  %898 = vmatpush1.msra.mxu0 0.0
  %899 = vmatprep.subr.mxu0 0.0
  %900 = vmatpush1.msra.mxu0 0.0
  %901 = vmatprep.subr.mxu0 0.0
  %902 = vmatpush1.msra.mxu0 0.0
  %903 = vmatprep.subr.mxu0 0.0
  %904 = vmatpush1.msra.mxu0 0.0
  %905 = vmatprep.subr.mxu0 0.0
  %906 = vmatpush1.msra.mxu0 0.0
  %907 = vmatprep.subr.mxu0 0.0
  %908 = vmatpush1.msra.mxu0 %v14
  %909 = vmatprep.subr.mxu0 0.0
  %910 = vmatpush2.msra.mxu0 0.0
  %911 = vmatprep.subr.mxu0 0.0
  %912 = vmatpush2.msra.mxu0 0.0
  %913 = vmatprep.subr.mxu0 0.0
  %914 = vmatpush2.msra.mxu0 0.0
  %915 = vmatprep.subr.mxu0 0.0
  %916 = vmatpush2.msra.mxu0 0.0
  %917 = vmatprep.subr.mxu0 0.0
  %918 = vmatpush2.msra.mxu0 0.0
  %919 = vmatprep.subr.mxu0 0.0
  %920 = vmatpush2.msra.mxu0 0.0
  %921 = vmatprep.subr.mxu0 0.0
  %922 = vmatpush2.msra.mxu0 0.0
  %923 = vmatprep.subr.mxu0 0.0
  %924 = vmatpush2.msra.mxu0 0.0
  %925 = vmatprep.subr.mxu0 0.0
  %926 = vmatpush2.msra.mxu0 0.0
  %927 = vmatprep.subr.mxu0 0.0
  %928 = vmatpush2.msra.mxu0 0.0
  %929 = vmatprep.subr.mxu0 0.0
  %930 = vmatpush2.msra.mxu0 0.0
  %931 = vmatprep.subr.mxu0 0.0
  %932 = vmatpush2.msra.mxu0 0.0
  %933 = vmatprep.subr.mxu0 0.0
  %934 = vmatpush2.msra.mxu0 0.0
  %935 = vmatprep.subr.mxu0 0.0
  %936 = vmatpush2.msra.mxu0 0.0
  %937 = vmatprep.subr.mxu0 0.0
  %938 = vmatpush2.msra.mxu0 0.0
  %939 = vmatprep.subr.mxu0 0.0
  %940 = vmatpush2.msra.mxu0 0.0
  %941 = vmatprep.mubr.f32.mxu0 0.0
  %942 = vmatmul.mubr.f32.gmra.mxu0 %v872
  %v943 = vpop.f32.mrf.mxu0
  %v944 = vadd.f32 %v870, %v943
  %v945 = vpop.f32.mrf.mxu0
  %946 = vmatprep.mubr.f32.mxu0 0.0
  %947 = vmatmul.mubr.f32.gmra.mxu0 %v875
  %v948 = vpop.f32.mrf.mxu0
  %v949 = vadd.f32 %v870, %v948
  %v950 = vpop.f32.mrf.mxu0
  %951 = vdwg.mxu0
  %vm952 = vcmask 31744
  %v953 = vsel %vm952, 0.0, 0
  %v956 = vsel %vm801, %v15, 0
  %958 = vmatprep.subr.mxu0 0.0
  %959 = vmatpush1.msra.mxu0 0.0
  %960 = vmatprep.subr.mxu0 0.0
  %961 = vmatpush1.msra.mxu0 0.0
  %962 = vmatprep.subr.mxu0 0.0
  %963 = vmatpush1.msra.mxu0 0.0
  %964 = vmatprep.subr.mxu0 0.0
  %965 = vmatpush1.msra.mxu0 0.0
  %966 = vmatprep.subr.mxu0 0.0
  %967 = vmatpush1.msra.mxu0 0.0
  %968 = vmatprep.subr.mxu0 0.0
  %969 = vmatpush1.msra.mxu0 0.0
  %970 = vmatprep.subr.mxu0 0.0
  %971 = vmatpush1.msra.mxu0 0.0
  %972 = vmatprep.subr.mxu0 0.0
  %973 = vmatpush1.msra.mxu0 0.0
  %974 = vmatprep.subr.mxu0 0.0
  %975 = vmatpush1.msra.mxu0 0.0
  %976 = vmatprep.subr.mxu0 0.0
  %977 = vmatpush1.msra.mxu0 0.0
  %978 = vmatprep.subr.mxu0 0.0
  %979 = vmatpush1.msra.mxu0 0.0
  %980 = vmatprep.subr.mxu0 0.0
  %981 = vmatpush1.msra.mxu0 0.0
  %982 = vmatprep.subr.mxu0 0.0
  %983 = vmatpush1.msra.mxu0 0.0
  %984 = vmatprep.subr.mxu0 0.0
  %985 = vmatpush1.msra.mxu0 0.0
  %986 = vmatprep.subr.mxu0 0.0
  %987 = vmatpush1.msra.mxu0 0.0
  %988 = vmatprep.subr.mxu0 0.0
  %989 = vmatpush1.msra.mxu0 %v956
  %990 = vmatprep.subr.mxu0 0.0
  %991 = vmatpush2.msra.mxu0 0.0
  %992 = vmatprep.subr.mxu0 0.0
  %993 = vmatpush2.msra.mxu0 0.0
  %994 = vmatprep.subr.mxu0 0.0
  %995 = vmatpush2.msra.mxu0 0.0
  %996 = vmatprep.subr.mxu0 0.0
  %997 = vmatpush2.msra.mxu0 0.0
  %998 = vmatprep.subr.mxu0 0.0
  %999 = vmatpush2.msra.mxu0 0.0
  %1000 = vmatprep.subr.mxu0 0.0
  %1001 = vmatpush2.msra.mxu0 0.0
  %1002 = vmatprep.subr.mxu0 0.0
  %1003 = vmatpush2.msra.mxu0 0.0
  %1004 = vmatprep.subr.mxu0 0.0
  %1005 = vmatpush2.msra.mxu0 0.0
  %1006 = vmatprep.subr.mxu0 0.0
  %1007 = vmatpush2.msra.mxu0 0.0
  %1008 = vmatprep.subr.mxu0 0.0
  %1009 = vmatpush2.msra.mxu0 0.0
  %1010 = vmatprep.subr.mxu0 0.0
  %1011 = vmatpush2.msra.mxu0 0.0
  %1012 = vmatprep.subr.mxu0 0.0
  %1013 = vmatpush2.msra.mxu0 0.0
  %1014 = vmatprep.subr.mxu0 0.0
  %1015 = vmatpush2.msra.mxu0 0.0
  %1016 = vmatprep.subr.mxu0 0.0
  %1017 = vmatpush2.msra.mxu0 0.0
  %1018 = vmatprep.subr.mxu0 0.0
  %1019 = vmatpush2.msra.mxu0 0.0
  %1020 = vmatprep.subr.mxu0 0.0
  %1021 = vmatpush2.msra.mxu0 0.0
  %1022 = vmatprep.mubr.f32.mxu0 0.0
  %1023 = vmatmul.mubr.f32.gmra.mxu0 %v953
  %v1024 = vpop.f32.mrf.mxu0
  %v1025 = vadd.f32 0.0, %v1024
  %v1026 = vpop.f32.mrf.mxu0
  %1027 = vdwg.mxu0
  %v1029 = vrot.slane %v1025, 1
  %v1032 = vadd.f32 %v944, %v1025
  %v1033 = vadd.f32 %v949, %v1029
  %v1034 = vtanh.pop %v1032
  %v1035 = vtanh.pop %v1033
  %v1038 = vrot.slane %v1035, 7
  %v1039 = vsel %vm196, %v1038, %v1034
  %v1040 = vsel %vm952, %v1039, 0
  %1042 = vmatprep.subr.mxu0 0.0
  %1043 = vmatpush1.msra.mxu0 0.0
  %1044 = vmatprep.subr.mxu0 0.0
  %1045 = vmatpush1.msra.mxu0 0.0
  %1046 = vmatprep.subr.mxu0 0.0
  %1047 = vmatpush1.msra.mxu0 0.0
  %1048 = vmatprep.subr.mxu0 0.0
  %1049 = vmatpush1.msra.mxu0 0.0
  %1050 = vmatprep.subr.mxu0 0.0
  %1051 = vmatpush1.msra.mxu0 0.0
  %1052 = vmatprep.subr.mxu0 0.0
  %1053 = vmatpush1.msra.mxu0 0.0
  %1054 = vmatprep.subr.mxu0 0.0
  %1055 = vmatpush1.msra.mxu0 0.0
  %1056 = vmatprep.subr.mxu0 0.0
  %1057 = vmatpush1.msra.mxu0 0.0
  %1058 = vmatprep.subr.mxu0 0.0
  %1059 = vmatpush1.msra.mxu0 0.0
  %1060 = vmatprep.subr.mxu0 0.0
  %1061 = vmatpush1.msra.mxu0 0.0
  %1062 = vmatprep.subr.mxu0 0.0
  %1063 = vmatpush1.msra.mxu0 0.0
  %1064 = vmatprep.subr.mxu0 0.0
  %1065 = vmatpush1.msra.mxu0 0.0
  %1066 = vmatprep.subr.mxu0 0.0
  %1067 = vmatpush1.msra.mxu0 0.0
  %1068 = vmatprep.subr.mxu0 0.0
  %1069 = vmatpush1.msra.mxu0 0.0
  %1070 = vmatprep.subr.mxu0 0.0
  %1071 = vmatpush1.msra.mxu0 0.0
  %1072 = vmatprep.subr.mxu0 0.0
  %1073 = vmatpush1.msra.mxu0 %v956
  %1074 = vmatprep.subr.mxu0 0.0
  %1075 = vmatpush2.msra.mxu0 0.0
  %1076 = vmatprep.subr.mxu0 0.0
  %1077 = vmatpush2.msra.mxu0 0.0
  %1078 = vmatprep.subr.mxu0 0.0
  %1079 = vmatpush2.msra.mxu0 0.0
  %1080 = vmatprep.subr.mxu0 0.0
  %1081 = vmatpush2.msra.mxu0 0.0
  %1082 = vmatprep.subr.mxu0 0.0
  %1083 = vmatpush2.msra.mxu0 0.0
  %1084 = vmatprep.subr.mxu0 0.0
  %1085 = vmatpush2.msra.mxu0 0.0
  %1086 = vmatprep.subr.mxu0 0.0
  %1087 = vmatpush2.msra.mxu0 0.0
  %1088 = vmatprep.subr.mxu0 0.0
  %1089 = vmatpush2.msra.mxu0 0.0
  %1090 = vmatprep.subr.mxu0 0.0
  %1091 = vmatpush2.msra.mxu0 0.0
  %1092 = vmatprep.subr.mxu0 0.0
  %1093 = vmatpush2.msra.mxu0 0.0
  %1094 = vmatprep.subr.mxu0 0.0
  %1095 = vmatpush2.msra.mxu0 0.0
  %1096 = vmatprep.subr.mxu0 0.0
  %1097 = vmatpush2.msra.mxu0 0.0
  %1098 = vmatprep.subr.mxu0 0.0
  %1099 = vmatpush2.msra.mxu0 0.0
  %1100 = vmatprep.subr.mxu0 0.0
  %1101 = vmatpush2.msra.mxu0 0.0
  %1102 = vmatprep.subr.mxu0 0.0
  %1103 = vmatpush2.msra.mxu0 0.0
  %1104 = vmatprep.subr.mxu0 0.0
  %1105 = vmatpush2.msra.mxu0 0.0
  %1106 = vmatprep.mubr.f32.mxu0 0.0
  %1107 = vmatmul.mubr.f32.gmra.mxu0 %v1040
  %v1108 = vpop.f32.mrf.mxu0
  %v1109 = vadd.f32 0.0, %v1108
  %v1110 = vpop.f32.mrf.mxu0
  %1111 = vdwg.mxu0
  %v1113 = vrot.slane %v1109, 7
  %v1116 = vadd.f32 %v944, %v1113
  %v1117 = vadd.f32 %v949, %v1109
  %v1118 = vtanh.pop %v1116
  %v1119 = vtanh.pop %v1117
  %v1122 = vrot.slane %v1118, 1
  %v1123 = vsel %vm196, %v1119, %v1122
  %v1124 = vsel %vm952, %v1123, 0
  %1126 = vmatprep.subr.mxu0 0.0
  %1127 = vmatpush1.msra.mxu0 0.0
  %1128 = vmatprep.subr.mxu0 0.0
  %1129 = vmatpush1.msra.mxu0 0.0
  %1130 = vmatprep.subr.mxu0 0.0
  %1131 = vmatpush1.msra.mxu0 0.0
  %1132 = vmatprep.subr.mxu0 0.0
  %1133 = vmatpush1.msra.mxu0 0.0
  %1134 = vmatprep.subr.mxu0 0.0
  %1135 = vmatpush1.msra.mxu0 0.0
  %1136 = vmatprep.subr.mxu0 0.0
  %1137 = vmatpush1.msra.mxu0 0.0
  %1138 = vmatprep.subr.mxu0 0.0
  %1139 = vmatpush1.msra.mxu0 0.0
  %1140 = vmatprep.subr.mxu0 0.0
  %1141 = vmatpush1.msra.mxu0 0.0
  %1142 = vmatprep.subr.mxu0 0.0
  %1143 = vmatpush1.msra.mxu0 0.0
  %1144 = vmatprep.subr.mxu0 0.0
  %1145 = vmatpush1.msra.mxu0 0.0
  %1146 = vmatprep.subr.mxu0 0.0
  %1147 = vmatpush1.msra.mxu0 0.0
  %1148 = vmatprep.subr.mxu0 0.0
  %1149 = vmatpush1.msra.mxu0 0.0
  %1150 = vmatprep.subr.mxu0 0.0
  %1151 = vmatpush1.msra.mxu0 0.0
  %1152 = vmatprep.subr.mxu0 0.0
  %1153 = vmatpush1.msra.mxu0 0.0
  %1154 = vmatprep.subr.mxu0 0.0
  %1155 = vmatpush1.msra.mxu0 0.0
  %1156 = vmatprep.subr.mxu0 0.0
  %1157 = vmatpush1.msra.mxu0 %v956
  %1158 = vmatprep.subr.mxu0 0.0
  %1159 = vmatpush2.msra.mxu0 0.0
  %1160 = vmatprep.subr.mxu0 0.0
  %1161 = vmatpush2.msra.mxu0 0.0
  %1162 = vmatprep.subr.mxu0 0.0
  %1163 = vmatpush2.msra.mxu0 0.0
  %1164 = vmatprep.subr.mxu0 0.0
  %1165 = vmatpush2.msra.mxu0 0.0
  %1166 = vmatprep.subr.mxu0 0.0
  %1167 = vmatpush2.msra.mxu0 0.0
  %1168 = vmatprep.subr.mxu0 0.0
  %1169 = vmatpush2.msra.mxu0 0.0
  %1170 = vmatprep.subr.mxu0 0.0
  %1171 = vmatpush2.msra.mxu0 0.0
  %1172 = vmatprep.subr.mxu0 0.0
  %1173 = vmatpush2.msra.mxu0 0.0
  %1174 = vmatprep.subr.mxu0 0.0
  %1175 = vmatpush2.msra.mxu0 0.0
  %1176 = vmatprep.subr.mxu0 0.0
  %1177 = vmatpush2.msra.mxu0 0.0
  %1178 = vmatprep.subr.mxu0 0.0
  %1179 = vmatpush2.msra.mxu0 0.0
  %1180 = vmatprep.subr.mxu0 0.0
  %1181 = vmatpush2.msra.mxu0 0.0
  %1182 = vmatprep.subr.mxu0 0.0
  %1183 = vmatpush2.msra.mxu0 0.0
  %1184 = vmatprep.subr.mxu0 0.0
  %1185 = vmatpush2.msra.mxu0 0.0
  %1186 = vmatprep.subr.mxu0 0.0
  %1187 = vmatpush2.msra.mxu0 0.0
  %1188 = vmatprep.subr.mxu0 0.0
  %1189 = vmatpush2.msra.mxu0 0.0
  %1190 = vmatprep.mubr.f32.mxu0 0.0
  %1191 = vmatmul.mubr.f32.gmra.mxu0 %v1124
  %v1192 = vpop.f32.mrf.mxu0
  %v1193 = vadd.f32 0.0, %v1192
  %v1194 = vpop.f32.mrf.mxu0
  %1195 = vdwg.mxu0
  %v1197 = vrot.slane %v1193, 6
  %v1198 = vrot.slane %v1193, 7
  %v1201 = vadd.f32 %v944, %v1197
  %v1202 = vadd.f32 %v949, %v1198
  %v1203 = vtanh.pop %v1201
  %v1204 = vtanh.pop %v1202
  %v1207 = vrot.slane %v1203, 2
  %v1208 = vrot.slane %v1204, 1
  %v1209 = vsel %vm196, %v1208, %v1207
  %v1210 = vsel %vm952, %v1209, 0
  %1212 = vmatprep.subr.mxu0 0.0
  %1213 = vmatpush1.msra.mxu0 0.0
  %1214 = vmatprep.subr.mxu0 0.0
  %1215 = vmatpush1.msra.mxu0 0.0
  %1216 = vmatprep.subr.mxu0 0.0
  %1217 = vmatpush1.msra.mxu0 0.0
  %1218 = vmatprep.subr.mxu0 0.0
  %1219 = vmatpush1.msra.mxu0 0.0
  %1220 = vmatprep.subr.mxu0 0.0
  %1221 = vmatpush1.msra.mxu0 0.0
  %1222 = vmatprep.subr.mxu0 0.0
  %1223 = vmatpush1.msra.mxu0 0.0
  %1224 = vmatprep.subr.mxu0 0.0
  %1225 = vmatpush1.msra.mxu0 0.0
  %1226 = vmatprep.subr.mxu0 0.0
  %1227 = vmatpush1.msra.mxu0 0.0
  %1228 = vmatprep.subr.mxu0 0.0
  %1229 = vmatpush1.msra.mxu0 0.0
  %1230 = vmatprep.subr.mxu0 0.0
  %1231 = vmatpush1.msra.mxu0 0.0
  %1232 = vmatprep.subr.mxu0 0.0
  %1233 = vmatpush1.msra.mxu0 0.0
  %1234 = vmatprep.subr.mxu0 0.0
  %1235 = vmatpush1.msra.mxu0 0.0
  %1236 = vmatprep.subr.mxu0 0.0
  %1237 = vmatpush1.msra.mxu0 0.0
  %1238 = vmatprep.subr.mxu0 0.0
  %1239 = vmatpush1.msra.mxu0 0.0
  %1240 = vmatprep.subr.mxu0 0.0
  %1241 = vmatpush1.msra.mxu0 0.0
  %1242 = vmatprep.subr.mxu0 0.0
  %1243 = vmatpush1.msra.mxu0 %v956
  %1244 = vmatprep.subr.mxu0 0.0
  %1245 = vmatpush2.msra.mxu0 0.0
  %1246 = vmatprep.subr.mxu0 0.0
  %1247 = vmatpush2.msra.mxu0 0.0
  %1248 = vmatprep.subr.mxu0 0.0
  %1249 = vmatpush2.msra.mxu0 0.0
  %1250 = vmatprep.subr.mxu0 0.0
  %1251 = vmatpush2.msra.mxu0 0.0
  %1252 = vmatprep.subr.mxu0 0.0
  %1253 = vmatpush2.msra.mxu0 0.0
  %1254 = vmatprep.subr.mxu0 0.0
  %1255 = vmatpush2.msra.mxu0 0.0
  %1256 = vmatprep.subr.mxu0 0.0
  %1257 = vmatpush2.msra.mxu0 0.0
  %1258 = vmatprep.subr.mxu0 0.0
  %1259 = vmatpush2.msra.mxu0 0.0
  %1260 = vmatprep.subr.mxu0 0.0
  %1261 = vmatpush2.msra.mxu0 0.0
  %1262 = vmatprep.subr.mxu0 0.0
  %1263 = vmatpush2.msra.mxu0 0.0
  %1264 = vmatprep.subr.mxu0 0.0
  %1265 = vmatpush2.msra.mxu0 0.0
  %1266 = vmatprep.subr.mxu0 0.0
  %1267 = vmatpush2.msra.mxu0 0.0
  %1268 = vmatprep.subr.mxu0 0.0
  %1269 = vmatpush2.msra.mxu0 0.0
  %1270 = vmatprep.subr.mxu0 0.0
  %1271 = vmatpush2.msra.mxu0 0.0
  %1272 = vmatprep.subr.mxu0 0.0
  %1273 = vmatpush2.msra.mxu0 0.0
  %1274 = vmatprep.subr.mxu0 0.0
  %1275 = vmatpush2.msra.mxu0 0.0
  %1276 = vmatprep.mubr.f32.mxu0 0.0
  %1277 = vmatmul.mubr.f32.gmra.mxu0 %v1210
  %v1278 = vpop.f32.mrf.mxu0
  %v1279 = vadd.f32 0.0, %v1278
  %v1280 = vpop.f32.mrf.mxu0
  %1281 = vdwg.mxu0
  %v1283 = vrot.slane %v1279, 5
  %v1284 = vrot.slane %v1279, 6
  %v1287 = vadd.f32 %v944, %v1283
  %v1288 = vadd.f32 %v949, %v1284
  %v1289 = vtanh.pop %v1287
  %v1290 = vtanh.pop %v1288
  %v1293 = vrot.slane %v1289, 3
  %v1294 = vrot.slane %v1290, 2
  %v1295 = vsel %vm196, %v1294, %v1293
  %v1296 = vsel %vm952, %v1295, 0
  %1298 = vmatprep.subr.mxu0 0.0
  %1299 = vmatpush1.msra.mxu0 0.0
  %1300 = vmatprep.subr.mxu0 0.0
  %1301 = vmatpush1.msra.mxu0 0.0
  %1302 = vmatprep.subr.mxu0 0.0
  %1303 = vmatpush1.msra.mxu0 0.0
  %1304 = vmatprep.subr.mxu0 0.0
  %1305 = vmatpush1.msra.mxu0 0.0
  %1306 = vmatprep.subr.mxu0 0.0
  %1307 = vmatpush1.msra.mxu0 0.0
  %1308 = vmatprep.subr.mxu0 0.0
  %1309 = vmatpush1.msra.mxu0 0.0
  %1310 = vmatprep.subr.mxu0 0.0
  %1311 = vmatpush1.msra.mxu0 0.0
  %1312 = vmatprep.subr.mxu0 0.0
  %1313 = vmatpush1.msra.mxu0 0.0
  %1314 = vmatprep.subr.mxu0 0.0
  %1315 = vmatpush1.msra.mxu0 0.0
  %1316 = vmatprep.subr.mxu0 0.0
  %1317 = vmatpush1.msra.mxu0 0.0
  %1318 = vmatprep.subr.mxu0 0.0
  %1319 = vmatpush1.msra.mxu0 0.0
  %1320 = vmatprep.subr.mxu0 0.0
  %1321 = vmatpush1.msra.mxu0 0.0
  %1322 = vmatprep.subr.mxu0 0.0
  %1323 = vmatpush1.msra.mxu0 0.0
  %1324 = vmatprep.subr.mxu0 0.0
  %1325 = vmatpush1.msra.mxu0 0.0
  %1326 = vmatprep.subr.mxu0 0.0
  %1327 = vmatpush1.msra.mxu0 0.0
  %1328 = vmatprep.subr.mxu0 0.0
  %1329 = vmatpush1.msra.mxu0 %v956
  %1330 = vmatprep.subr.mxu0 0.0
  %1331 = vmatpush2.msra.mxu0 0.0
  %1332 = vmatprep.subr.mxu0 0.0
  %1333 = vmatpush2.msra.mxu0 0.0
  %1334 = vmatprep.subr.mxu0 0.0
  %1335 = vmatpush2.msra.mxu0 0.0
  %1336 = vmatprep.subr.mxu0 0.0
  %1337 = vmatpush2.msra.mxu0 0.0
  %1338 = vmatprep.subr.mxu0 0.0
  %1339 = vmatpush2.msra.mxu0 0.0
  %1340 = vmatprep.subr.mxu0 0.0
  %1341 = vmatpush2.msra.mxu0 0.0
  %1342 = vmatprep.subr.mxu0 0.0
  %1343 = vmatpush2.msra.mxu0 0.0
  %1344 = vmatprep.subr.mxu0 0.0
  %1345 = vmatpush2.msra.mxu0 0.0
  %1346 = vmatprep.subr.mxu0 0.0
  %1347 = vmatpush2.msra.mxu0 0.0
  %1348 = vmatprep.subr.mxu0 0.0
  %1349 = vmatpush2.msra.mxu0 0.0
  %1350 = vmatprep.subr.mxu0 0.0
  %1351 = vmatpush2.msra.mxu0 0.0
  %1352 = vmatprep.subr.mxu0 0.0
  %1353 = vmatpush2.msra.mxu0 0.0
  %1354 = vmatprep.subr.mxu0 0.0
  %1355 = vmatpush2.msra.mxu0 0.0
  %1356 = vmatprep.subr.mxu0 0.0
  %1357 = vmatpush2.msra.mxu0 0.0
  %1358 = vmatprep.subr.mxu0 0.0
  %1359 = vmatpush2.msra.mxu0 0.0
  %1360 = vmatprep.subr.mxu0 0.0
  %1361 = vmatpush2.msra.mxu0 0.0
  %1362 = vmatprep.mubr.f32.mxu0 0.0
  %1363 = vmatmul.mubr.f32.gmra.mxu0 %v1296
  %v1364 = vpop.f32.mrf.mxu0
  %v1365 = vadd.f32 0.0, %v1364
  %v1366 = vpop.f32.mrf.mxu0
  %1367 = vdwg.mxu0
  %v1369 = vrot.slane %v1365, 4
  %v1370 = vrot.slane %v1365, 5
  %v1373 = vadd.f32 %v944, %v1369
  %v1374 = vadd.f32 %v949, %v1370
  %v1375 = vtanh.pop %v1373
  %v1376 = vtanh.pop %v1374
  %v1379 = vrot.slane %v1375, 4
  %v1380 = vrot.slane %v1376, 3
  %v1381 = vsel %vm196, %v1380, %v1379
  %v1382 = vsel %vm952, %v1381, 0
  %1384 = vmatprep.subr.mxu0 0.0
  %1385 = vmatpush1.msra.mxu0 0.0
  %1386 = vmatprep.subr.mxu0 0.0
  %1387 = vmatpush1.msra.mxu0 0.0
  %1388 = vmatprep.subr.mxu0 0.0
  %1389 = vmatpush1.msra.mxu0 0.0
  %1390 = vmatprep.subr.mxu0 0.0
  %1391 = vmatpush1.msra.mxu0 0.0
  %1392 = vmatprep.subr.mxu0 0.0
  %1393 = vmatpush1.msra.mxu0 0.0
  %1394 = vmatprep.subr.mxu0 0.0
  %1395 = vmatpush1.msra.mxu0 0.0
  %1396 = vmatprep.subr.mxu0 0.0
  %1397 = vmatpush1.msra.mxu0 0.0
  %1398 = vmatprep.subr.mxu0 0.0
  %1399 = vmatpush1.msra.mxu0 0.0
  %1400 = vmatprep.subr.mxu0 0.0
  %1401 = vmatpush1.msra.mxu0 0.0
  %1402 = vmatprep.subr.mxu0 0.0
  %1403 = vmatpush1.msra.mxu0 0.0
  %1404 = vmatprep.subr.mxu0 0.0
  %1405 = vmatpush1.msra.mxu0 0.0
  %1406 = vmatprep.subr.mxu0 0.0
  %1407 = vmatpush1.msra.mxu0 0.0
  %1408 = vmatprep.subr.mxu0 0.0
  %1409 = vmatpush1.msra.mxu0 0.0
  %1410 = vmatprep.subr.mxu0 0.0
  %1411 = vmatpush1.msra.mxu0 0.0
  %1412 = vmatprep.subr.mxu0 0.0
  %1413 = vmatpush1.msra.mxu0 0.0
  %1414 = vmatprep.subr.mxu0 0.0
  %1415 = vmatpush1.msra.mxu0 %v956
  %1416 = vmatprep.subr.mxu0 0.0
  %1417 = vmatpush2.msra.mxu0 0.0
  %1418 = vmatprep.subr.mxu0 0.0
  %1419 = vmatpush2.msra.mxu0 0.0
  %1420 = vmatprep.subr.mxu0 0.0
  %1421 = vmatpush2.msra.mxu0 0.0
  %1422 = vmatprep.subr.mxu0 0.0
  %1423 = vmatpush2.msra.mxu0 0.0
  %1424 = vmatprep.subr.mxu0 0.0
  %1425 = vmatpush2.msra.mxu0 0.0
  %1426 = vmatprep.subr.mxu0 0.0
  %1427 = vmatpush2.msra.mxu0 0.0
  %1428 = vmatprep.subr.mxu0 0.0
  %1429 = vmatpush2.msra.mxu0 0.0
  %1430 = vmatprep.subr.mxu0 0.0
  %1431 = vmatpush2.msra.mxu0 0.0
  %1432 = vmatprep.subr.mxu0 0.0
  %1433 = vmatpush2.msra.mxu0 0.0
  %1434 = vmatprep.subr.mxu0 0.0
  %1435 = vmatpush2.msra.mxu0 0.0
  %1436 = vmatprep.subr.mxu0 0.0
  %1437 = vmatpush2.msra.mxu0 0.0
  %1438 = vmatprep.subr.mxu0 0.0
  %1439 = vmatpush2.msra.mxu0 0.0
  %1440 = vmatprep.subr.mxu0 0.0
  %1441 = vmatpush2.msra.mxu0 0.0
  %1442 = vmatprep.subr.mxu0 0.0
  %1443 = vmatpush2.msra.mxu0 0.0
  %1444 = vmatprep.subr.mxu0 0.0
  %1445 = vmatpush2.msra.mxu0 0.0
  %1446 = vmatprep.subr.mxu0 0.0
  %1447 = vmatpush2.msra.mxu0 0.0
  %1448 = vmatprep.mubr.f32.mxu0 0.0
  %1449 = vmatmul.mubr.f32.gmra.mxu0 %v1382
  %v1450 = vpop.f32.mrf.mxu0
  %v1451 = vadd.f32 0.0, %v1450
  %v1452 = vpop.f32.mrf.mxu0
  %1453 = vdwg.mxu0
  %v1455 = vrot.slane %v1451, 3
  %v1456 = vrot.slane %v1451, 4
  %v1459 = vadd.f32 %v944, %v1455
  %v1460 = vadd.f32 %v949, %v1456
  %v1461 = vtanh.pop %v1459
  %v1462 = vtanh.pop %v1460
  %v1465 = vrot.slane %v1461, 5
  %v1466 = vrot.slane %v1462, 4
  %v1467 = vsel %vm196, %v1466, %v1465
  %v1468 = vsel %vm952, %v1467, 0
  %1470 = vmatprep.subr.mxu0 0.0
  %1471 = vmatpush1.msra.mxu0 0.0
  %1472 = vmatprep.subr.mxu0 0.0
  %1473 = vmatpush1.msra.mxu0 0.0
  %1474 = vmatprep.subr.mxu0 0.0
  %1475 = vmatpush1.msra.mxu0 0.0
  %1476 = vmatprep.subr.mxu0 0.0
  %1477 = vmatpush1.msra.mxu0 0.0
  %1478 = vmatprep.subr.mxu0 0.0
  %1479 = vmatpush1.msra.mxu0 0.0
  %1480 = vmatprep.subr.mxu0 0.0
  %1481 = vmatpush1.msra.mxu0 0.0
  %1482 = vmatprep.subr.mxu0 0.0
  %1483 = vmatpush1.msra.mxu0 0.0
  %1484 = vmatprep.subr.mxu0 0.0
  %1485 = vmatpush1.msra.mxu0 0.0
  %1486 = vmatprep.subr.mxu0 0.0
  %1487 = vmatpush1.msra.mxu0 0.0
  %1488 = vmatprep.subr.mxu0 0.0
  %1489 = vmatpush1.msra.mxu0 0.0
  %1490 = vmatprep.subr.mxu0 0.0
  %1491 = vmatpush1.msra.mxu0 0.0
  %1492 = vmatprep.subr.mxu0 0.0
  %1493 = vmatpush1.msra.mxu0 0.0
  %1494 = vmatprep.subr.mxu0 0.0
  %1495 = vmatpush1.msra.mxu0 0.0
  %1496 = vmatprep.subr.mxu0 0.0
  %1497 = vmatpush1.msra.mxu0 0.0
  %1498 = vmatprep.subr.mxu0 0.0
  %1499 = vmatpush1.msra.mxu0 0.0
  %1500 = vmatprep.subr.mxu0 0.0
  %1501 = vmatpush1.msra.mxu0 %v956
  %1502 = vmatprep.subr.mxu0 0.0
  %1503 = vmatpush2.msra.mxu0 0.0
  %1504 = vmatprep.subr.mxu0 0.0
  %1505 = vmatpush2.msra.mxu0 0.0
  %1506 = vmatprep.subr.mxu0 0.0
  %1507 = vmatpush2.msra.mxu0 0.0
  %1508 = vmatprep.subr.mxu0 0.0
  %1509 = vmatpush2.msra.mxu0 0.0
  %1510 = vmatprep.subr.mxu0 0.0
  %1511 = vmatpush2.msra.mxu0 0.0
  %1512 = vmatprep.subr.mxu0 0.0
  %1513 = vmatpush2.msra.mxu0 0.0
  %1514 = vmatprep.subr.mxu0 0.0
  %1515 = vmatpush2.msra.mxu0 0.0
  %1516 = vmatprep.subr.mxu0 0.0
  %1517 = vmatpush2.msra.mxu0 0.0
  %1518 = vmatprep.subr.mxu0 0.0
  %1519 = vmatpush2.msra.mxu0 0.0
  %1520 = vmatprep.subr.mxu0 0.0
  %1521 = vmatpush2.msra.mxu0 0.0
  %1522 = vmatprep.subr.mxu0 0.0
  %1523 = vmatpush2.msra.mxu0 0.0
  %1524 = vmatprep.subr.mxu0 0.0
  %1525 = vmatpush2.msra.mxu0 0.0
  %1526 = vmatprep.subr.mxu0 0.0
  %1527 = vmatpush2.msra.mxu0 0.0
  %1528 = vmatprep.subr.mxu0 0.0
  %1529 = vmatpush2.msra.mxu0 0.0
  %1530 = vmatprep.subr.mxu0 0.0
  %1531 = vmatpush2.msra.mxu0 0.0
  %1532 = vmatprep.subr.mxu0 0.0
  %1533 = vmatpush2.msra.mxu0 0.0
  %1534 = vmatprep.mubr.f32.mxu0 0.0
  %1535 = vmatmul.mubr.f32.gmra.mxu0 %v1468
  %v1536 = vpop.f32.mrf.mxu0
  %v1537 = vadd.f32 0.0, %v1536
  %v1538 = vpop.f32.mrf.mxu0
  %1539 = vdwg.mxu0
  %v1541 = vrot.slane %v1537, 2
  %v1542 = vrot.slane %v1537, 3
  %v1545 = vadd.f32 %v944, %v1541
  %v1546 = vadd.f32 %v949, %v1542
  %v1547 = vtanh.pop %v1545
  %v1548 = vtanh.pop %v1546
  %v1551 = vrot.slane %v1547, 6
  %v1552 = vrot.slane %v1548, 5
  %v1553 = vsel %vm196, %v1552, %v1551
  %v1554 = vsel %vm952, %v1553, 0
  %1556 = vmatprep.subr.mxu0 0.0
  %1557 = vmatpush1.msra.mxu0 0.0
  %1558 = vmatprep.subr.mxu0 0.0
  %1559 = vmatpush1.msra.mxu0 0.0
  %1560 = vmatprep.subr.mxu0 0.0
  %1561 = vmatpush1.msra.mxu0 0.0
  %1562 = vmatprep.subr.mxu0 0.0
  %1563 = vmatpush1.msra.mxu0 0.0
  %1564 = vmatprep.subr.mxu0 0.0
  %1565 = vmatpush1.msra.mxu0 0.0
  %1566 = vmatprep.subr.mxu0 0.0
  %1567 = vmatpush1.msra.mxu0 0.0
  %1568 = vmatprep.subr.mxu0 0.0
  %1569 = vmatpush1.msra.mxu0 0.0
  %1570 = vmatprep.subr.mxu0 0.0
  %1571 = vmatpush1.msra.mxu0 0.0
  %1572 = vmatprep.subr.mxu0 0.0
  %1573 = vmatpush1.msra.mxu0 0.0
  %1574 = vmatprep.subr.mxu0 0.0
  %1575 = vmatpush1.msra.mxu0 0.0
  %1576 = vmatprep.subr.mxu0 0.0
  %1577 = vmatpush1.msra.mxu0 0.0
  %1578 = vmatprep.subr.mxu0 0.0
  %1579 = vmatpush1.msra.mxu0 0.0
  %1580 = vmatprep.subr.mxu0 0.0
  %1581 = vmatpush1.msra.mxu0 0.0
  %1582 = vmatprep.subr.mxu0 0.0
  %1583 = vmatpush1.msra.mxu0 0.0
  %1584 = vmatprep.subr.mxu0 0.0
  %1585 = vmatpush1.msra.mxu0 0.0
  %1586 = vmatprep.subr.mxu0 0.0
  %1587 = vmatpush1.msra.mxu0 %v956
  %1588 = vmatprep.subr.mxu0 0.0
  %1589 = vmatpush2.msra.mxu0 0.0
  %1590 = vmatprep.subr.mxu0 0.0
  %1591 = vmatpush2.msra.mxu0 0.0
  %1592 = vmatprep.subr.mxu0 0.0
  %1593 = vmatpush2.msra.mxu0 0.0
  %1594 = vmatprep.subr.mxu0 0.0
  %1595 = vmatpush2.msra.mxu0 0.0
  %1596 = vmatprep.subr.mxu0 0.0
  %1597 = vmatpush2.msra.mxu0 0.0
  %1598 = vmatprep.subr.mxu0 0.0
  %1599 = vmatpush2.msra.mxu0 0.0
  %1600 = vmatprep.subr.mxu0 0.0
  %1601 = vmatpush2.msra.mxu0 0.0
  %1602 = vmatprep.subr.mxu0 0.0
  %1603 = vmatpush2.msra.mxu0 0.0
  %1604 = vmatprep.subr.mxu0 0.0
  %1605 = vmatpush2.msra.mxu0 0.0
  %1606 = vmatprep.subr.mxu0 0.0
  %1607 = vmatpush2.msra.mxu0 0.0
  %1608 = vmatprep.subr.mxu0 0.0
  %1609 = vmatpush2.msra.mxu0 0.0
  %1610 = vmatprep.subr.mxu0 0.0
  %1611 = vmatpush2.msra.mxu0 0.0
  %1612 = vmatprep.subr.mxu0 0.0
  %1613 = vmatpush2.msra.mxu0 0.0
  %1614 = vmatprep.subr.mxu0 0.0
  %1615 = vmatpush2.msra.mxu0 0.0
  %1616 = vmatprep.subr.mxu0 0.0
  %1617 = vmatpush2.msra.mxu0 0.0
  %1618 = vmatprep.subr.mxu0 0.0
  %1619 = vmatpush2.msra.mxu0 0.0
  %1620 = vmatprep.mubr.f32.mxu0 0.0
  %1621 = vmatmul.mubr.f32.gmra.mxu0 %v1554
  %v1622 = vpop.f32.mrf.mxu0
  %v1623 = vadd.f32 0.0, %v1622
  %v1624 = vpop.f32.mrf.mxu0
  %1625 = vdwg.mxu0
  %v1627 = vrot.slane %v1623, 1
  %v1628 = vrot.slane %v1623, 2
  %v1631 = vadd.f32 %v944, %v1627
  %v1632 = vadd.f32 %v949, %v1628
  %v1633 = vtanh.pop %v1631
  %v1634 = vtanh.pop %v1632
  %v1635 = vsel %vm793, %v1034, %v1118
  %v1636 = vsel %vm793, %v1035, %v1119
  %v1637 = vsel %vm796, %v1635, %v1203
  %v1638 = vsel %vm796, %v1636, %v1204
  %v1639 = vsel %vm32, %v1637, %v1289
  %v1640 = vsel %vm32, %v1638, %v1290
  %v1641 = vsel %vm801, %v1639, %v1375
  %v1642 = vsel %vm801, %v1640, %v1376
  %v1643 = vsel %vm804, %v1641, %v1461
  %v1644 = vsel %vm804, %v1642, %v1462
  %v1645 = vsel %vm807, %v1643, %v1547
  %v1646 = vsel %vm807, %v1644, %v1548
  %v1647 = vsel %vm810, %v1645, %v1633
  %v1648 = vsel %vm810, %v1646, %v1634
  %v1649 = vlaneseq
  %v1650 = vshrl.u32 %v1649, 7
  %v1651 = vsub.s32 0, %v1650
  %v1652 = vrot.slane %v18, %v1651
  %v1654 = vsel %vm952, %v1647, 0
  %v1657 = vsel %vm952, %v1648, 0
  %v1660 = vsel %vm801, %v17, 0
  %1662 = vmatprep.subr.mxu0 0.0
  %1663 = vmatpush1.msra.mxu0 0.0
  %1664 = vmatprep.subr.mxu0 0.0
  %1665 = vmatpush1.msra.mxu0 0.0
  %1666 = vmatprep.subr.mxu0 0.0
  %1667 = vmatpush1.msra.mxu0 0.0
  %1668 = vmatprep.subr.mxu0 0.0
  %1669 = vmatpush1.msra.mxu0 0.0
  %1670 = vmatprep.subr.mxu0 0.0
  %1671 = vmatpush1.msra.mxu0 0.0
  %1672 = vmatprep.subr.mxu0 0.0
  %1673 = vmatpush1.msra.mxu0 0.0
  %1674 = vmatprep.subr.mxu0 0.0
  %1675 = vmatpush1.msra.mxu0 0.0
  %1676 = vmatprep.subr.mxu0 0.0
  %1677 = vmatpush1.msra.mxu0 0.0
  %1678 = vmatprep.subr.mxu0 0.0
  %1679 = vmatpush1.msra.mxu0 0.0
  %1680 = vmatprep.subr.mxu0 0.0
  %1681 = vmatpush1.msra.mxu0 0.0
  %1682 = vmatprep.subr.mxu0 0.0
  %1683 = vmatpush1.msra.mxu0 0.0
  %1684 = vmatprep.subr.mxu0 0.0
  %1685 = vmatpush1.msra.mxu0 0.0
  %1686 = vmatprep.subr.mxu0 0.0
  %1687 = vmatpush1.msra.mxu0 0.0
  %1688 = vmatprep.subr.mxu0 0.0
  %1689 = vmatpush1.msra.mxu0 0.0
  %1690 = vmatprep.subr.mxu0 0.0
  %1691 = vmatpush1.msra.mxu0 0.0
  %1692 = vmatprep.subr.mxu0 0.0
  %1693 = vmatpush1.msra.mxu0 %v1660
  %1694 = vmatprep.subr.mxu0 0.0
  %1695 = vmatpush2.msra.mxu0 0.0
  %1696 = vmatprep.subr.mxu0 0.0
  %1697 = vmatpush2.msra.mxu0 0.0
  %1698 = vmatprep.subr.mxu0 0.0
  %1699 = vmatpush2.msra.mxu0 0.0
  %1700 = vmatprep.subr.mxu0 0.0
  %1701 = vmatpush2.msra.mxu0 0.0
  %1702 = vmatprep.subr.mxu0 0.0
  %1703 = vmatpush2.msra.mxu0 0.0
  %1704 = vmatprep.subr.mxu0 0.0
  %1705 = vmatpush2.msra.mxu0 0.0
  %1706 = vmatprep.subr.mxu0 0.0
  %1707 = vmatpush2.msra.mxu0 0.0
  %1708 = vmatprep.subr.mxu0 0.0
  %1709 = vmatpush2.msra.mxu0 0.0
  %1710 = vmatprep.subr.mxu0 0.0
  %1711 = vmatpush2.msra.mxu0 0.0
  %1712 = vmatprep.subr.mxu0 0.0
  %1713 = vmatpush2.msra.mxu0 0.0
  %1714 = vmatprep.subr.mxu0 0.0
  %1715 = vmatpush2.msra.mxu0 0.0
  %1716 = vmatprep.subr.mxu0 0.0
  %1717 = vmatpush2.msra.mxu0 0.0
  %1718 = vmatprep.subr.mxu0 0.0
  %1719 = vmatpush2.msra.mxu0 0.0
  %1720 = vmatprep.subr.mxu0 0.0
  %1721 = vmatpush2.msra.mxu0 0.0
  %1722 = vmatprep.subr.mxu0 0.0
  %1723 = vmatpush2.msra.mxu0 0.0
  %1724 = vmatprep.subr.mxu0 0.0
  %1725 = vmatpush2.msra.mxu0 0.0
  %1726 = vmatprep.mubr.f32.mxu0 0.0
  %1727 = vmatmul.mubr.f32.gmra.mxu0 %v1654
  %v1728 = vpop.f32.mrf.mxu0
  %v1729 = vadd.f32 %v1652, %v1728
  %v1730 = vpop.f32.mrf.mxu0
  %1731 = vmatprep.mubr.f32.mxu0 0.0
  %1732 = vmatmul.mubr.f32.gmra.mxu0 %v1657
  %v1733 = vpop.f32.mrf.mxu0
  %v1734 = vadd.f32 %v1652, %v1733
  %v1735 = vpop.f32.mrf.mxu0
  %1736 = vdwg.mxu0
  %v1739 = vrot.slane %v792, 7
  %v1744 = vrot.slane %v1634, 7
  %1745 = vrot.lane.b32.xlu0 %v1633, 8
  %v1746 = vpop.permute.xlu0 %1745
  %1747 = vrot.lane.b32.xlu0 %v1744, 8
  %v1748 = vpop.permute.xlu0 %1747
  %v1751 = vsel %vm111, %v791, %v1746
  %v1752 = vsel %vm111, %v1739, %v1748
  %vm1753 = vcmask 97280
  %v1754 = vsel %vm1753, %v1751, 0.0
  %v1755 = vsel %vm1753, %v1752, 0.0
  %1756 = vst [vmem:[%s2] sm:$0xff] %v1729
  %1757 = vst [vmem:[%s2 + $0x8] sm:$0xff] %v1734
  %1758 = vst [vmem:[%s2 + $0x9] sm:$0x80] %v1754
  %1759 = vst [vmem:[%s2 + $0x11] sm:$0x1] %v1755
  // Predicated region
  $region10: #{rnn_forward.1} parent=0 // pred_check
    _
  $region11: #{rnn_forward.1} parent=0 // pred_check_branch
    %1761 = sbr.rel (0) target = $region13
  $region12: #{rnn_forward.1} parent=0 // pred_region
    _
  $region13: #{rnn_forward.1} parent=0 // pred_fallthru
    _
  // Predicated region
  $region14: #{rnn_forward.1} parent=0 // pred_check
    _
  $region15: #{rnn_forward.1} parent=0 // pred_check_branch
    %1763 = sbr.rel (0) target = $region17
  $region16: #{rnn_forward.1} parent=0 // pred_region
    _
  $region17: #{rnn_forward.1} parent=0 // pred_fallthru
    _

</llo_original>
